<compile_context>
chip_gen: v6e
topology: v6e:2x2x1
jax: 0.10.0
libtpu: 0.0.40
codegen_flags: <defaults>
</compile_context>

<pallas_src>
import jax
import jax.numpy as jnp
from jax.experimental import pallas as pl
from jax.experimental.pallas import tpu as pltpu


# ----------------------------- kernel -------------------------------------- #
def _layernorm(x, g, b, eps=1e-5):
    m = jnp.mean(x, axis=-1, keepdims=True)
    v = jnp.mean((x - m) ** 2, axis=-1, keepdims=True)
    return (x - m) * jax.lax.rsqrt(v + eps) * g + b


def make_kernel(depth):
    def kernel(x_ref, wsm_ref, fcwT_ref, fcb_ref,
               g1s, b1s, w1Ts, bb1s, w2Ts, bb2s,
               g2s, b2s, w3Ts, bb3s, w4Ts, bb4s,
               lnf_g, lnf_b, wh1T, bh1, wh2T, bh2, wh3T, bh3,
               out_ref):
        TB, C, K = x_ref.shape          # C = wl (channels), K = wt * p
        P = fcwT_ref.shape[1]           # P = wt (patches / tokens)
        f32 = jnp.float32

        # ---- Embed: x * softmax(w) (softmax precomputed in wrapper), FC over K,
        #      rearrange 'b c p -> b p c' --------------------------------------
        xw = x_ref[...] * wsm_ref[...]                                  # (TB, C, K)
        y = jnp.dot(xw.reshape(TB * C, K), fcwT_ref[...],
                    preferred_element_type=f32) + fcb_ref[...]          # (TB*C, P)
        x = jnp.transpose(y.reshape(TB, C, P), (0, 2, 1))               # (TB, P, C)

        # ---- Mixer blocks (statically unrolled; depth is small) --------------
        for d in range(depth):
            # token mix
            ln = _layernorm(x.reshape(TB * P, C), g1s[d], b1s[d])
            t = jnp.transpose(ln.reshape(TB, P, C), (0, 2, 1)).reshape(TB * C, P)
            t = jnp.maximum(
                jnp.dot(t, w1Ts[d], preferred_element_type=f32) + bb1s[d], 0.0)
            t = jnp.dot(t, w2Ts[d], preferred_element_type=f32) + bb2s[d]   # (TB*C, P)
            x = x + jnp.transpose(t.reshape(TB, C, P), (0, 2, 1))
            # channel mix
            ln = _layernorm(x.reshape(TB * P, C), g2s[d], b2s[d])
            u = jnp.maximum(
                jnp.dot(ln, w3Ts[d], preferred_element_type=f32) + bb3s[d], 0.0)
            u = jnp.dot(u, w4Ts[d], preferred_element_type=f32) + bb4s[d]   # (TB*P, C)
            x = x + u.reshape(TB, P, C)

        # ---- final LayerNorm, mean over patches, MLP head --------------------
        ln = _layernorm(x.reshape(TB * P, C), lnf_g[...], lnf_b[...])
        ln3 = jnp.transpose(ln.reshape(TB, P, C), (0, 2, 1))            # (TB, C, P)
        pooled = jnp.mean(ln3, axis=-1)                                 # (TB, C)
        h = jnp.maximum(
            jnp.dot(pooled, wh1T[...], preferred_element_type=f32) + bh1[...], 0.0)
        h = jnp.maximum(
            jnp.dot(h, wh2T[...], preferred_element_type=f32) + bh2[...], 0.0)
        out_ref[...] = jnp.dot(h, wh3T[...],
                               preferred_element_type=f32) + bh3[...]   # (TB, 3n)

    return kernel


# ----------------------------- wrapper -------------------------------------- #
def prepare_kernel_params(params, cfg):
    """Torch-layout params -> kernel params: softmax hoisted, weights pre-transposed,
    per-block params stacked along a leading depth axis."""
    wl, wt, p = cfg["wl"], cfg["wt"], cfg["p"]
    depth, tuo = cfg["depth"], cfg["tuo"]
    it = iter(params)
    embw = next(it); fcw = next(it); fcb = next(it)
    blocks = [tuple(next(it) for _ in range(12)) for _ in range(depth)]
    lnf_g = next(it); lnf_b = next(it)
    wh1 = next(it); bh1 = next(it); wh2 = next(it); bh2 = next(it)
    wh3 = next(it); bh3 = next(it)

    # Embed softmax is grid-invariant: compute once here (same f32 math as torch).
    w_sm = jax.nn.softmax(embw.reshape(-1) / tuo).reshape(wl, wt * p)

    def stack(idx, transpose=False):
        arrs = [blocks[d][idx] for d in range(depth)]
        if transpose:
            arrs = [a.T for a in arrs]
        return jnp.stack(arrs, axis=0)

    kp = [
        w_sm, fcw.T, fcb,
        stack(0), stack(1), stack(2, True), stack(3), stack(4, True), stack(5),
        stack(6), stack(7), stack(8, True), stack(9), stack(10, True), stack(11),
        lnf_g, lnf_b, wh1.T, bh1, wh2.T, bh2, wh3.T, bh3,
    ]
    return [a.astype(jnp.float32) for a in kp]


def mlp_mixer_reg(x, params, cfg, tb=None):
    bs = x.shape[0]
    wl, wt, p = cfg["wl"], cfg["wt"], cfg["p"]
    n, depth = cfg["n"], cfg["depth"]
    K = wt * p
    out_dim = 3 * n  # numberWT == 1:  n + n + n

    x2 = x.reshape(bs, wl, K).astype(jnp.float32)   # row-major, same as torch .view

    # Batch tile: many samples per grid step (amortizes grid overhead, feeds MXU).
    if tb is None:
        tb = bs if bs <= 128 else 128
    if bs > tb:
        tb = max(8, (tb // 8) * 8)   # keep (8,128) rule on the (TB, out_dim) block
    n_tiles = pl.cdiv(bs, tb)
    bs_pad = n_tiles * tb
    if bs_pad != bs:
        x2 = jnp.pad(x2, ((0, bs_pad - bs), (0, 0), (0, 0)))

    kparams = prepare_kernel_params(params, cfg)

    in_specs = [pl.BlockSpec((tb, wl, K), lambda b: (b, 0, 0))]
    for a in kparams:   # weights/biases: full array, constant index map (stay resident)
        in_specs.append(pl.BlockSpec(a.shape, lambda b, nd=a.ndim: (0,) * nd))

    head = pl.pallas_call(
        make_kernel(depth),
        grid=(n_tiles,),
        in_specs=in_specs,
        out_specs=pl.BlockSpec((tb, out_dim), lambda b: (b, 0)),
        out_shape=jax.ShapeDtypeStruct((bs_pad, out_dim), jnp.float32),
        compiler_params=pltpu.CompilerParams(dimension_semantics=("parallel",)),
    )(x2, *kparams)

    # glue: split head into (mu, b, tanh(sigma)*tanhK) exactly like torch .view
    head = head[:bs].reshape(bs, 1, n, 3)
    mu = head[:, 0, :, 0]
    bb = head[:, 0, :, 1]
    sig = jnp.tanh(head[:, 0, :, 2]) * cfg["tanhK"]
    return mu, bb, sig


# ----------------------------- params --------------------------------------- #
def init_params(key, cfg):
    wl, wt, p = cfg["wl"], cfg["wt"], cfg["p"]
    hid, n, depth = cfg["hiddenDim"], cfg["n"], cfg["depth"]
    numberWT = 1
    C = wl
    P = wt * numberWT
    token_dim = wt * numberWT
    K = p * wt

    def linear(k, out_f, in_f):
        k1, k2 = jax.random.split(k)
        bound = 1.0 / (in_f ** 0.5)
        w = jax.random.uniform(k1, (out_f, in_f), jnp.float32, -bound, bound)
        b = jax.random.uniform(k2, (1, out_f), jnp.float32, -bound, bound)
        return w, b

    keys = iter(jax.random.split(key, 4 + 4 * depth + 8))
    params = []
    # Embed: weight initialized to ones (per __init__), FC linear
    params.append(jnp.ones((wl, K), jnp.float32))
    w, b = linear(next(keys), wt * numberWT, K)
    params += [w, b]
    # Mixer blocks
    for _ in range(depth):
        params += [jnp.ones((1, C), jnp.float32), jnp.zeros((1, C), jnp.float32)]  # ln1
        w1, b1 = linear(next(keys), token_dim, P)   # FeedForward(num_patch -> token_dim)
        w2, b2 = linear(next(keys), P, token_dim)
        params += [w1, b1, w2, b2]
        params += [jnp.ones((1, C), jnp.float32), jnp.zeros((1, C), jnp.float32)]  # ln2
        w3, b3 = linear(next(keys), hid, C)          # FeedForward(wl -> hiddenDim)
        w4, b4 = linear(next(keys), C, hid)
        params += [w3, b3, w4, b4]
    # final LayerNorm
    params += [jnp.ones((1, C), jnp.float32), jnp.zeros((1, C), jnp.float32)]
    # MLP head
    w, b = linear(next(keys), 2 * C * numberWT, C);                 params += [w, b]
    w, b = linear(next(keys), 2 * C * numberWT, 2 * C * numberWT);  params += [w, b]
    out_f = n + n * numberWT + n * numberWT * numberWT
    w, b = linear(next(keys), out_f, 2 * C * numberWT);             params += [w, b]
    return params


# ----------------------------- reference ------------------------------------ #
def reference_forward(x, params, cfg):
    """Pure-JAX mirror of the PyTorch forward (numberWT == 1)."""
    hp = jax.lax.Precision.HIGHEST
    bs = x.shape[0]
    wl, wt, p = cfg["wl"], cfg["wt"], cfg["p"]
    n, depth, tuo = cfg["n"], cfg["depth"], cfg["tuo"]
    it = iter(params)
    embw = next(it); fcw = next(it); fcb = next(it)
    blocks = [tuple(next(it) for _ in range(12)) for _ in range(depth)]
    lnf_g = next(it); lnf_b = next(it)
    wh1 = next(it); bh1 = next(it); wh2 = next(it); bh2 = next(it)
    wh3 = next(it); bh3 = next(it)

    def ln(z, g, b):
        m = jnp.mean(z, -1, keepdims=True)
        v = jnp.mean((z - m) ** 2, -1, keepdims=True)
        return (z - m) / jnp.sqrt(v + 1e-5) * g + b

    xf = x.reshape(bs, -1).astype(jnp.float32)
    w_sm = jax.nn.softmax(embw.reshape(-1) / tuo)
    xf = xf * w_sm
    xf = xf.reshape(bs, wl, wt * p)
    xf = jnp.einsum("blk,ok->blo", xf, fcw, precision=hp) + fcb[0]
    xf = jnp.transpose(xf, (0, 2, 1))                       # (bs, P, C)
    for (g1, b1, w1, bb1, w2, bb2, g2, b2_, w3, bb3, w4, bb4) in blocks:
        t = ln(xf, g1[0], b1[0])
        t = jnp.transpose(t, (0, 2, 1))
        t = jax.nn.relu(jnp.einsum("bcp,dp->bcd", t, w1, precision=hp) + bb1[0])
        t = jnp.einsum("bcd,pd->bcp", t, w2, precision=hp) + bb2[0]
        xf = xf + jnp.transpose(t, (0, 2, 1))
        u = ln(xf, g2[0], b2_[0])
        u = jax.nn.relu(jnp.einsum("bpc,hc->bph", u, w3, precision=hp) + bb3[0])
        u = jnp.einsum("bph,ch->bpc", u, w4, precision=hp) + bb4[0]
        xf = xf + u
    xf = ln(xf, lnf_g[0], lnf_b[0]).mean(axis=1)            # (bs, C)
    h = jax.nn.relu(xf @ wh1.T + bh1[0])
    h = jax.nn.relu(h @ wh2.T + bh2[0])
    out = h @ wh3.T + bh3[0]
    out = out.reshape(bs, 1, n, 3)
    return out[:, 0, :, 0], out[:, 0, :, 1], jnp.tanh(out[:, 0, :, 2]) * cfg["tanhK"]


# ----------------------------- main ----------------------------------------- #
if __name__ == "__main__":
    # hyperParaModel (small): inputShape = (wl, wtTotalNum, p); embeddingD == wtTotalNum
    # so the token-mix Linear(num_patch -> token_dim) shapes line up. wtNum scalar
    # -> numberWT == 1 branch.
    cfg = dict(wl=16, wt=8, p=4, hiddenDim=32, n=4, depth=2, tanhK=2.0, tuo=1.0)
    bs = 2

    key = jax.random.PRNGKey(0)
    kx, kp, kx2 = jax.random.split(key, 3)
    x = jax.random.normal(kx, (bs, cfg["wl"], cfg["wt"], cfg["p"]), jnp.float32)
    params = init_params(kp, cfg)

    # single-tile path (grid = (1,))
    mu, b_out, sig = mlp_mixer_reg(x, params, cfg)
    jax.block_until_ready((mu, b_out, sig))
    mu_r, b_r, sig_r = reference_forward(x, params, cfg)
    assert mu.shape == (bs, cfg["n"]) and b_out.shape == (bs, cfg["n"]) and sig.shape == (bs, cfg["n"])
    assert jnp.allclose(mu, mu_r, atol=2e-3, rtol=2e-3)
    assert jnp.allclose(b_out, b_r, atol=2e-3, rtol=2e-3)
    assert jnp.allclose(sig, sig_r, atol=2e-3, rtol=2e-3)

    # multi-tile path with batch padding (bs=20, TB=8 -> grid=(3,))
    bs2 = 20
    x2 = jax.random.normal(kx2, (bs2, cfg["wl"], cfg["wt"], cfg["p"]), jnp.float32)
    mu2, b2_out, sig2 = mlp_mixer_reg(x2, params, cfg, tb=8)
    jax.block_until_ready((mu2, b2_out, sig2))
    mu2_r, b2_r, sig2_r = reference_forward(x2, params, cfg)
    assert jnp.allclose(mu2, mu2_r, atol=2e-3, rtol=2e-3)
    assert jnp.allclose(b2_out, b2_r, atol=2e-3, rtol=2e-3)
    assert jnp.allclose(sig2, sig2_r, atol=2e-3, rtol=2e-3)

    # TODO(synk): numberWT > 1 branch (tril / diag_embed covariance head) not implemented;
    # this script covers the numberWT == 1 forward path.
    print("KERNEL_OK")
</pallas_src>

<mosaic_0001>
module attributes {stable_mosaic.version = 11 : i64} {
  func.func @kernel(%arg0: i32, %arg1: memref<2x16x32xf32, #tpu.memory_space<vmem>>, %arg2: memref<16x32xf32, #tpu.memory_space<vmem>>, %arg3: memref<32x8xf32, #tpu.memory_space<vmem>>, %arg4: memref<1x8xf32, #tpu.memory_space<vmem>>, %arg5: memref<2x1x16xf32, #tpu.memory_space<vmem>>, %arg6: memref<2x1x16xf32, #tpu.memory_space<vmem>>, %arg7: memref<2x8x8xf32, #tpu.memory_space<vmem>>, %arg8: memref<2x1x8xf32, #tpu.memory_space<vmem>>, %arg9: memref<2x8x8xf32, #tpu.memory_space<vmem>>, %arg10: memref<2x1x8xf32, #tpu.memory_space<vmem>>, %arg11: memref<2x1x16xf32, #tpu.memory_space<vmem>>, %arg12: memref<2x1x16xf32, #tpu.memory_space<vmem>>, %arg13: memref<2x16x32xf32, #tpu.memory_space<vmem>>, %arg14: memref<2x1x32xf32, #tpu.memory_space<vmem>>, %arg15: memref<2x32x16xf32, #tpu.memory_space<vmem>>, %arg16: memref<2x1x16xf32, #tpu.memory_space<vmem>>, %arg17: memref<1x16xf32, #tpu.memory_space<vmem>>, %arg18: memref<1x16xf32, #tpu.memory_space<vmem>>, %arg19: memref<16x32xf32, #tpu.memory_space<vmem>>, %arg20: memref<1x32xf32, #tpu.memory_space<vmem>>, %arg21: memref<32x32xf32, #tpu.memory_space<vmem>>, %arg22: memref<1x32xf32, #tpu.memory_space<vmem>>, %arg23: memref<32x12xf32, #tpu.memory_space<vmem>>, %arg24: memref<1x12xf32, #tpu.memory_space<vmem>>, %arg25: memref<2x12xf32, #tpu.memory_space<vmem>>) attributes {dimension_semantics = [#tpu.dimension_semantics<parallel>], iteration_bounds = array<i64: 1>, scalar_prefetch = 0 : i64, scratch_operands = 0 : i64, tpu.core_type = #tpu.core_type<tc>, window_params = [{transform_indices = @transform_0, window_bounds = array<i64: 2, 16, 32>}, {pipeline_mode = #tpu.pipeline_mode<synchronous>, transform_indices = @transform_1, window_bounds = array<i64: 16, 32>}, {pipeline_mode = #tpu.pipeline_mode<synchronous>, transform_indices = @transform_2, window_bounds = array<i64: 32, 8>}, {pipeline_mode = #tpu.pipeline_mode<synchronous>, transform_indices = @transform_3, window_bounds = array<i64: 1, 8>}, {pipeline_mode = #tpu.pipeline_mode<synchronous>, transform_indices = @transform_4, window_bounds = array<i64: 2, 1, 16>}, {pipeline_mode = #tpu.pipeline_mode<synchronous>, transform_indices = @transform_5, window_bounds = array<i64: 2, 1, 16>}, {pipeline_mode = #tpu.pipeline_mode<synchronous>, transform_indices = @transform_6, window_bounds = array<i64: 2, 8, 8>}, {pipeline_mode = #tpu.pipeline_mode<synchronous>, transform_indices = @transform_7, window_bounds = array<i64: 2, 1, 8>}, {pipeline_mode = #tpu.pipeline_mode<synchronous>, transform_indices = @transform_8, window_bounds = array<i64: 2, 8, 8>}, {pipeline_mode = #tpu.pipeline_mode<synchronous>, transform_indices = @transform_9, window_bounds = array<i64: 2, 1, 8>}, {pipeline_mode = #tpu.pipeline_mode<synchronous>, transform_indices = @transform_10, window_bounds = array<i64: 2, 1, 16>}, {pipeline_mode = #tpu.pipeline_mode<synchronous>, transform_indices = @transform_11, window_bounds = array<i64: 2, 1, 16>}, {pipeline_mode = #tpu.pipeline_mode<synchronous>, transform_indices = @transform_12, window_bounds = array<i64: 2, 16, 32>}, {pipeline_mode = #tpu.pipeline_mode<synchronous>, transform_indices = @transform_13, window_bounds = array<i64: 2, 1, 32>}, {pipeline_mode = #tpu.pipeline_mode<synchronous>, transform_indices = @transform_14, window_bounds = array<i64: 2, 32, 16>}, {pipeline_mode = #tpu.pipeline_mode<synchronous>, transform_indices = @transform_15, window_bounds = array<i64: 2, 1, 16>}, {pipeline_mode = #tpu.pipeline_mode<synchronous>, transform_indices = @transform_16, window_bounds = array<i64: 1, 16>}, {pipeline_mode = #tpu.pipeline_mode<synchronous>, transform_indices = @transform_17, window_bounds = array<i64: 1, 16>}, {pipeline_mode = #tpu.pipeline_mode<synchronous>, transform_indices = @transform_18, window_bounds = array<i64: 16, 32>}, {pipeline_mode = #tpu.pipeline_mode<synchronous>, transform_indices = @transform_19, window_bounds = array<i64: 1, 32>}, {pipeline_mode = #tpu.pipeline_mode<synchronous>, transform_indices = @transform_20, window_bounds = array<i64: 32, 32>}, {pipeline_mode = #tpu.pipeline_mode<synchronous>, transform_indices = @transform_21, window_bounds = array<i64: 1, 32>}, {pipeline_mode = #tpu.pipeline_mode<synchronous>, transform_indices = @transform_22, window_bounds = array<i64: 32, 12>}, {pipeline_mode = #tpu.pipeline_mode<synchronous>, transform_indices = @transform_23, window_bounds = array<i64: 1, 12>}, {transform_indices = @transform_24, window_bounds = array<i64: 2, 12>}]} {
    %c0 = arith.constant 0 : index
    %c0_0 = arith.constant 0 : index
    %c0_1 = arith.constant 0 : index
    %0 = vector.load %arg1[%c0, %c0_0, %c0_1] : memref<2x16x32xf32, #tpu.memory_space<vmem>>, vector<2x16x32xf32>
    %c0_2 = arith.constant 0 : index
    %c0_3 = arith.constant 0 : index
    %1 = vector.load %arg2[%c0_2, %c0_3] : memref<16x32xf32, #tpu.memory_space<vmem>>, vector<16x32xf32>
    %2 = vector.shape_cast %1 : vector<16x32xf32> to vector<1x16x32xf32>
    %3 = vector.broadcast %2 : vector<1x16x32xf32> to vector<2x16x32xf32>
    %4 = arith.mulf %0, %3 : vector<2x16x32xf32>
    %5 = vector.shape_cast %4 : vector<2x16x32xf32> to vector<32x32xf32>
    %c0_4 = arith.constant 0 : index
    %c0_5 = arith.constant 0 : index
    %6 = vector.load %arg3[%c0_4, %c0_5] : memref<32x8xf32, #tpu.memory_space<vmem>>, vector<32x8xf32>
    %cst = arith.constant dense<0.000000e+00> : vector<32x8xf32>
    %7 = tpu.matmul %5, %6, %cst {dimension_numbers = #tpu.dot_dimension_numbers<[1], [0], [0], [1], [0, 0, 1, 1], [], []>} : vector<32x32xf32>, vector<32x8xf32>, vector<32x8xf32> -> vector<32x8xf32>
    %c0_6 = arith.constant 0 : index
    %c0_7 = arith.constant 0 : index
    %8 = vector.load %arg4[%c0_6, %c0_7] : memref<1x8xf32, #tpu.memory_space<vmem>>, vector<1x8xf32>
    %9 = vector.broadcast %8 : vector<1x8xf32> to vector<32x8xf32>
    %10 = arith.addf %7, %9 : vector<32x8xf32>
    %11 = vector.shape_cast %10 : vector<32x8xf32> to vector<2x16x8xf32>
    %12 = tpu.transpose %11, [0, 2, 1] : vector<2x16x8xf32> -> vector<2x8x16xf32>
    %13 = vector.shape_cast %12 : vector<2x8x16xf32> to vector<16x16xf32>
    %c0_8 = arith.constant 0 : index
    %c0_9 = arith.constant 0 : index
    %c0_10 = arith.constant 0 : index
    %14 = vector.load %arg5[%c0_8, %c0_9, %c0_10] : memref<2x1x16xf32, #tpu.memory_space<vmem>>, vector<1x1x16xf32>
    %15 = vector.shape_cast %14 : vector<1x1x16xf32> to vector<1x16xf32>
    %c0_11 = arith.constant 0 : index
    %c0_12 = arith.constant 0 : index
    %c0_13 = arith.constant 0 : index
    %16 = vector.load %arg6[%c0_11, %c0_12, %c0_13] : memref<2x1x16xf32, #tpu.memory_space<vmem>>, vector<1x1x16xf32>
    %17 = vector.shape_cast %16 : vector<1x1x16xf32> to vector<1x16xf32>
    %cst_14 = arith.constant dense<0.000000e+00> : vector<16xf32>
    %18 = vector.multi_reduction <add>, %13, %cst_14 [1] : vector<16x16xf32> to vector<16xf32>
    %19 = vector.shape_cast %18 : vector<16xf32> to vector<16x1xf32>
    %cst_15 = arith.constant 1.600000e+01 : f32
    %20 = vector.broadcast %cst_15 : f32 to vector<16x1xf32>
    %21 = arith.divf %19, %20 : vector<16x1xf32>
    %22 = vector.broadcast %21 : vector<16x1xf32> to vector<16x16xf32>
    %23 = arith.subf %13, %22 : vector<16x16xf32>
    %24 = arith.mulf %23, %23 : vector<16x16xf32>
    %cst_16 = arith.constant dense<0.000000e+00> : vector<16xf32>
    %25 = vector.multi_reduction <add>, %24, %cst_16 [1] : vector<16x16xf32> to vector<16xf32>
    %26 = vector.shape_cast %25 : vector<16xf32> to vector<16x1xf32>
    %cst_17 = arith.constant 1.600000e+01 : f32
    %27 = vector.broadcast %cst_17 : f32 to vector<16x1xf32>
    %28 = arith.divf %26, %27 : vector<16x1xf32>
    %29 = vector.broadcast %21 : vector<16x1xf32> to vector<16x16xf32>
    %30 = arith.subf %13, %29 : vector<16x16xf32>
    %cst_18 = arith.constant 9.99999974E-6 : f32
    %31 = vector.broadcast %cst_18 : f32 to vector<16x1xf32>
    %32 = arith.addf %28, %31 : vector<16x1xf32>
    %33 = math.rsqrt %32 : vector<16x1xf32>
    %34 = vector.broadcast %33 : vector<16x1xf32> to vector<16x16xf32>
    %35 = arith.mulf %30, %34 : vector<16x16xf32>
    %36 = vector.broadcast %15 : vector<1x16xf32> to vector<16x16xf32>
    %37 = arith.mulf %35, %36 : vector<16x16xf32>
    %38 = vector.broadcast %17 : vector<1x16xf32> to vector<16x16xf32>
    %39 = arith.addf %37, %38 : vector<16x16xf32>
    %40 = vector.shape_cast %39 : vector<16x16xf32> to vector<2x8x16xf32>
    %41 = tpu.transpose %40, [0, 2, 1] : vector<2x8x16xf32> -> vector<2x16x8xf32>
    %42 = vector.shape_cast %41 : vector<2x16x8xf32> to vector<32x8xf32>
    %c0_19 = arith.constant 0 : index
    %c0_20 = arith.constant 0 : index
    %c0_21 = arith.constant 0 : index
    %43 = vector.load %arg7[%c0_19, %c0_20, %c0_21] : memref<2x8x8xf32, #tpu.memory_space<vmem>>, vector<1x8x8xf32>
    %44 = vector.shape_cast %43 : vector<1x8x8xf32> to vector<8x8xf32>
    %cst_22 = arith.constant dense<0.000000e+00> : vector<32x8xf32>
    %45 = tpu.matmul %42, %44, %cst_22 {dimension_numbers = #tpu.dot_dimension_numbers<[1], [0], [0], [1], [0, 0, 1, 1], [], []>} : vector<32x8xf32>, vector<8x8xf32>, vector<32x8xf32> -> vector<32x8xf32>
    %c0_23 = arith.constant 0 : index
    %c0_24 = arith.constant 0 : index
    %c0_25 = arith.constant 0 : index
    %46 = vector.load %arg8[%c0_23, %c0_24, %c0_25] : memref<2x1x8xf32, #tpu.memory_space<vmem>>, vector<1x1x8xf32>
    %47 = vector.shape_cast %46 : vector<1x1x8xf32> to vector<1x8xf32>
    %48 = vector.broadcast %47 : vector<1x8xf32> to vector<32x8xf32>
    %49 = arith.addf %45, %48 : vector<32x8xf32>
    %cst_26 = arith.constant 0.000000e+00 : f32
    %50 = vector.broadcast %cst_26 : f32 to vector<32x8xf32>
    %51 = arith.maximumf %49, %50 : vector<32x8xf32>
    %c0_27 = arith.constant 0 : index
    %c0_28 = arith.constant 0 : index
    %c0_29 = arith.constant 0 : index
    %52 = vector.load %arg9[%c0_27, %c0_28, %c0_29] : memref<2x8x8xf32, #tpu.memory_space<vmem>>, vector<1x8x8xf32>
    %53 = vector.shape_cast %52 : vector<1x8x8xf32> to vector<8x8xf32>
    %cst_30 = arith.constant dense<0.000000e+00> : vector<32x8xf32>
    %54 = tpu.matmul %51, %53, %cst_30 {dimension_numbers = #tpu.dot_dimension_numbers<[1], [0], [0], [1], [0, 0, 1, 1], [], []>} : vector<32x8xf32>, vector<8x8xf32>, vector<32x8xf32> -> vector<32x8xf32>
    %c0_31 = arith.constant 0 : index
    %c0_32 = arith.constant 0 : index
    %c0_33 = arith.constant 0 : index
    %55 = vector.load %arg10[%c0_31, %c0_32, %c0_33] : memref<2x1x8xf32, #tpu.memory_space<vmem>>, vector<1x1x8xf32>
    %56 = vector.shape_cast %55 : vector<1x1x8xf32> to vector<1x8xf32>
    %57 = vector.broadcast %56 : vector<1x8xf32> to vector<32x8xf32>
    %58 = arith.addf %54, %57 : vector<32x8xf32>
    %59 = vector.shape_cast %58 : vector<32x8xf32> to vector<2x16x8xf32>
    %60 = tpu.transpose %59, [0, 2, 1] : vector<2x16x8xf32> -> vector<2x8x16xf32>
    %61 = arith.addf %12, %60 : vector<2x8x16xf32>
    %62 = vector.shape_cast %61 : vector<2x8x16xf32> to vector<16x16xf32>
    %c0_34 = arith.constant 0 : index
    %c0_35 = arith.constant 0 : index
    %c0_36 = arith.constant 0 : index
    %63 = vector.load %arg11[%c0_34, %c0_35, %c0_36] : memref<2x1x16xf32, #tpu.memory_space<vmem>>, vector<1x1x16xf32>
    %64 = vector.shape_cast %63 : vector<1x1x16xf32> to vector<1x16xf32>
    %c0_37 = arith.constant 0 : index
    %c0_38 = arith.constant 0 : index
    %c0_39 = arith.constant 0 : index
    %65 = vector.load %arg12[%c0_37, %c0_38, %c0_39] : memref<2x1x16xf32, #tpu.memory_space<vmem>>, vector<1x1x16xf32>
    %66 = vector.shape_cast %65 : vector<1x1x16xf32> to vector<1x16xf32>
    %cst_40 = arith.constant dense<0.000000e+00> : vector<16xf32>
    %67 = vector.multi_reduction <add>, %62, %cst_40 [1] : vector<16x16xf32> to vector<16xf32>
    %68 = vector.shape_cast %67 : vector<16xf32> to vector<16x1xf32>
    %cst_41 = arith.constant 1.600000e+01 : f32
    %69 = vector.broadcast %cst_41 : f32 to vector<16x1xf32>
    %70 = arith.divf %68, %69 : vector<16x1xf32>
    %71 = vector.broadcast %70 : vector<16x1xf32> to vector<16x16xf32>
    %72 = arith.subf %62, %71 : vector<16x16xf32>
    %73 = arith.mulf %72, %72 : vector<16x16xf32>
    %cst_42 = arith.constant dense<0.000000e+00> : vector<16xf32>
    %74 = vector.multi_reduction <add>, %73, %cst_42 [1] : vector<16x16xf32> to vector<16xf32>
    %75 = vector.shape_cast %74 : vector<16xf32> to vector<16x1xf32>
    %cst_43 = arith.constant 1.600000e+01 : f32
    %76 = vector.broadcast %cst_43 : f32 to vector<16x1xf32>
    %77 = arith.divf %75, %76 : vector<16x1xf32>
    %78 = vector.broadcast %70 : vector<16x1xf32> to vector<16x16xf32>
    %79 = arith.subf %62, %78 : vector<16x16xf32>
    %cst_44 = arith.constant 9.99999974E-6 : f32
    %80 = vector.broadcast %cst_44 : f32 to vector<16x1xf32>
    %81 = arith.addf %77, %80 : vector<16x1xf32>
    %82 = math.rsqrt %81 : vector<16x1xf32>
    %83 = vector.broadcast %82 : vector<16x1xf32> to vector<16x16xf32>
    %84 = arith.mulf %79, %83 : vector<16x16xf32>
    %85 = vector.broadcast %64 : vector<1x16xf32> to vector<16x16xf32>
    %86 = arith.mulf %84, %85 : vector<16x16xf32>
    %87 = vector.broadcast %66 : vector<1x16xf32> to vector<16x16xf32>
    %88 = arith.addf %86, %87 : vector<16x16xf32>
    %c0_45 = arith.constant 0 : index
    %c0_46 = arith.constant 0 : index
    %c0_47 = arith.constant 0 : index
    %89 = vector.load %arg13[%c0_45, %c0_46, %c0_47] : memref<2x16x32xf32, #tpu.memory_space<vmem>>, vector<1x16x32xf32>
    %90 = vector.shape_cast %89 : vector<1x16x32xf32> to vector<16x32xf32>
    %cst_48 = arith.constant dense<0.000000e+00> : vector<16x32xf32>
    %91 = tpu.matmul %88, %90, %cst_48 {dimension_numbers = #tpu.dot_dimension_numbers<[1], [0], [0], [1], [0, 0, 1, 1], [], []>} : vector<16x16xf32>, vector<16x32xf32>, vector<16x32xf32> -> vector<16x32xf32>
    %c0_49 = arith.constant 0 : index
    %c0_50 = arith.constant 0 : index
    %c0_51 = arith.constant 0 : index
    %92 = vector.load %arg14[%c0_49, %c0_50, %c0_51] : memref<2x1x32xf32, #tpu.memory_space<vmem>>, vector<1x1x32xf32>
    %93 = vector.shape_cast %92 : vector<1x1x32xf32> to vector<1x32xf32>
    %94 = vector.broadcast %93 : vector<1x32xf32> to vector<16x32xf32>
    %95 = arith.addf %91, %94 : vector<16x32xf32>
    %cst_52 = arith.constant 0.000000e+00 : f32
    %96 = vector.broadcast %cst_52 : f32 to vector<16x32xf32>
    %97 = arith.maximumf %95, %96 : vector<16x32xf32>
    %c0_53 = arith.constant 0 : index
    %c0_54 = arith.constant 0 : index
    %c0_55 = arith.constant 0 : index
    %98 = vector.load %arg15[%c0_53, %c0_54, %c0_55] : memref<2x32x16xf32, #tpu.memory_space<vmem>>, vector<1x32x16xf32>
    %99 = vector.shape_cast %98 : vector<1x32x16xf32> to vector<32x16xf32>
    %cst_56 = arith.constant dense<0.000000e+00> : vector<16x16xf32>
    %100 = tpu.matmul %97, %99, %cst_56 {dimension_numbers = #tpu.dot_dimension_numbers<[1], [0], [0], [1], [0, 0, 1, 1], [], []>} : vector<16x32xf32>, vector<32x16xf32>, vector<16x16xf32> -> vector<16x16xf32>
    %c0_57 = arith.constant 0 : index
    %c0_58 = arith.constant 0 : index
    %c0_59 = arith.constant 0 : index
    %101 = vector.load %arg16[%c0_57, %c0_58, %c0_59] : memref<2x1x16xf32, #tpu.memory_space<vmem>>, vector<1x1x16xf32>
    %102 = vector.shape_cast %101 : vector<1x1x16xf32> to vector<1x16xf32>
    %103 = vector.broadcast %102 : vector<1x16xf32> to vector<16x16xf32>
    %104 = arith.addf %100, %103 : vector<16x16xf32>
    %105 = vector.shape_cast %104 : vector<16x16xf32> to vector<2x8x16xf32>
    %106 = arith.addf %61, %105 : vector<2x8x16xf32>
    %107 = vector.shape_cast %106 : vector<2x8x16xf32> to vector<16x16xf32>
    %c1 = arith.constant 1 : index
    %c0_60 = arith.constant 0 : index
    %c0_61 = arith.constant 0 : index
    %108 = vector.load %arg5[%c1, %c0_60, %c0_61] : memref<2x1x16xf32, #tpu.memory_space<vmem>>, vector<1x1x16xf32>
    %109 = vector.shape_cast %108 : vector<1x1x16xf32> to vector<1x16xf32>
    %c1_62 = arith.constant 1 : index
    %c0_63 = arith.constant 0 : index
    %c0_64 = arith.constant 0 : index
    %110 = vector.load %arg6[%c1_62, %c0_63, %c0_64] : memref<2x1x16xf32, #tpu.memory_space<vmem>>, vector<1x1x16xf32>
    %111 = vector.shape_cast %110 : vector<1x1x16xf32> to vector<1x16xf32>
    %cst_65 = arith.constant dense<0.000000e+00> : vector<16xf32>
    %112 = vector.multi_reduction <add>, %107, %cst_65 [1] : vector<16x16xf32> to vector<16xf32>
    %113 = vector.shape_cast %112 : vector<16xf32> to vector<16x1xf32>
    %cst_66 = arith.constant 1.600000e+01 : f32
    %114 = vector.broadcast %cst_66 : f32 to vector<16x1xf32>
    %115 = arith.divf %113, %114 : vector<16x1xf32>
    %116 = vector.broadcast %115 : vector<16x1xf32> to vector<16x16xf32>
    %117 = arith.subf %107, %116 : vector<16x16xf32>
    %118 = arith.mulf %117, %117 : vector<16x16xf32>
    %cst_67 = arith.constant dense<0.000000e+00> : vector<16xf32>
    %119 = vector.multi_reduction <add>, %118, %cst_67 [1] : vector<16x16xf32> to vector<16xf32>
    %120 = vector.shape_cast %119 : vector<16xf32> to vector<16x1xf32>
    %cst_68 = arith.constant 1.600000e+01 : f32
    %121 = vector.broadcast %cst_68 : f32 to vector<16x1xf32>
    %122 = arith.divf %120, %121 : vector<16x1xf32>
    %123 = vector.broadcast %115 : vector<16x1xf32> to vector<16x16xf32>
    %124 = arith.subf %107, %123 : vector<16x16xf32>
    %cst_69 = arith.constant 9.99999974E-6 : f32
    %125 = vector.broadcast %cst_69 : f32 to vector<16x1xf32>
    %126 = arith.addf %122, %125 : vector<16x1xf32>
    %127 = math.rsqrt %126 : vector<16x1xf32>
    %128 = vector.broadcast %127 : vector<16x1xf32> to vector<16x16xf32>
    %129 = arith.mulf %124, %128 : vector<16x16xf32>
    %130 = vector.broadcast %109 : vector<1x16xf32> to vector<16x16xf32>
    %131 = arith.mulf %129, %130 : vector<16x16xf32>
    %132 = vector.broadcast %111 : vector<1x16xf32> to vector<16x16xf32>
    %133 = arith.addf %131, %132 : vector<16x16xf32>
    %134 = vector.shape_cast %133 : vector<16x16xf32> to vector<2x8x16xf32>
    %135 = tpu.transpose %134, [0, 2, 1] : vector<2x8x16xf32> -> vector<2x16x8xf32>
    %136 = vector.shape_cast %135 : vector<2x16x8xf32> to vector<32x8xf32>
    %c1_70 = arith.constant 1 : index
    %c0_71 = arith.constant 0 : index
    %c0_72 = arith.constant 0 : index
    %137 = vector.load %arg7[%c1_70, %c0_71, %c0_72] : memref<2x8x8xf32, #tpu.memory_space<vmem>>, vector<1x8x8xf32>
    %138 = vector.shape_cast %137 : vector<1x8x8xf32> to vector<8x8xf32>
    %cst_73 = arith.constant dense<0.000000e+00> : vector<32x8xf32>
    %139 = tpu.matmul %136, %138, %cst_73 {dimension_numbers = #tpu.dot_dimension_numbers<[1], [0], [0], [1], [0, 0, 1, 1], [], []>} : vector<32x8xf32>, vector<8x8xf32>, vector<32x8xf32> -> vector<32x8xf32>
    %c1_74 = arith.constant 1 : index
    %c0_75 = arith.constant 0 : index
    %c0_76 = arith.constant 0 : index
    %140 = vector.load %arg8[%c1_74, %c0_75, %c0_76] : memref<2x1x8xf32, #tpu.memory_space<vmem>>, vector<1x1x8xf32>
    %141 = vector.shape_cast %140 : vector<1x1x8xf32> to vector<1x8xf32>
    %142 = vector.broadcast %141 : vector<1x8xf32> to vector<32x8xf32>
    %143 = arith.addf %139, %142 : vector<32x8xf32>
    %cst_77 = arith.constant 0.000000e+00 : f32
    %144 = vector.broadcast %cst_77 : f32 to vector<32x8xf32>
    %145 = arith.maximumf %143, %144 : vector<32x8xf32>
    %c1_78 = arith.constant 1 : index
    %c0_79 = arith.constant 0 : index
    %c0_80 = arith.constant 0 : index
    %146 = vector.load %arg9[%c1_78, %c0_79, %c0_80] : memref<2x8x8xf32, #tpu.memory_space<vmem>>, vector<1x8x8xf32>
    %147 = vector.shape_cast %146 : vector<1x8x8xf32> to vector<8x8xf32>
    %cst_81 = arith.constant dense<0.000000e+00> : vector<32x8xf32>
    %148 = tpu.matmul %145, %147, %cst_81 {dimension_numbers = #tpu.dot_dimension_numbers<[1], [0], [0], [1], [0, 0, 1, 1], [], []>} : vector<32x8xf32>, vector<8x8xf32>, vector<32x8xf32> -> vector<32x8xf32>
    %c1_82 = arith.constant 1 : index
    %c0_83 = arith.constant 0 : index
    %c0_84 = arith.constant 0 : index
    %149 = vector.load %arg10[%c1_82, %c0_83, %c0_84] : memref<2x1x8xf32, #tpu.memory_space<vmem>>, vector<1x1x8xf32>
    %150 = vector.shape_cast %149 : vector<1x1x8xf32> to vector<1x8xf32>
    %151 = vector.broadcast %150 : vector<1x8xf32> to vector<32x8xf32>
    %152 = arith.addf %148, %151 : vector<32x8xf32>
    %153 = vector.shape_cast %152 : vector<32x8xf32> to vector<2x16x8xf32>
    %154 = tpu.transpose %153, [0, 2, 1] : vector<2x16x8xf32> -> vector<2x8x16xf32>
    %155 = arith.addf %106, %154 : vector<2x8x16xf32>
    %156 = vector.shape_cast %155 : vector<2x8x16xf32> to vector<16x16xf32>
    %c1_85 = arith.constant 1 : index
    %c0_86 = arith.constant 0 : index
    %c0_87 = arith.constant 0 : index
    %157 = vector.load %arg11[%c1_85, %c0_86, %c0_87] : memref<2x1x16xf32, #tpu.memory_space<vmem>>, vector<1x1x16xf32>
    %158 = vector.shape_cast %157 : vector<1x1x16xf32> to vector<1x16xf32>
    %c1_88 = arith.constant 1 : index
    %c0_89 = arith.constant 0 : index
    %c0_90 = arith.constant 0 : index
    %159 = vector.load %arg12[%c1_88, %c0_89, %c0_90] : memref<2x1x16xf32, #tpu.memory_space<vmem>>, vector<1x1x16xf32>
    %160 = vector.shape_cast %159 : vector<1x1x16xf32> to vector<1x16xf32>
    %cst_91 = arith.constant dense<0.000000e+00> : vector<16xf32>
    %161 = vector.multi_reduction <add>, %156, %cst_91 [1] : vector<16x16xf32> to vector<16xf32>
    %162 = vector.shape_cast %161 : vector<16xf32> to vector<16x1xf32>
    %cst_92 = arith.constant 1.600000e+01 : f32
    %163 = vector.broadcast %cst_92 : f32 to vector<16x1xf32>
    %164 = arith.divf %162, %163 : vector<16x1xf32>
    %165 = vector.broadcast %164 : vector<16x1xf32> to vector<16x16xf32>
    %166 = arith.subf %156, %165 : vector<16x16xf32>
    %167 = arith.mulf %166, %166 : vector<16x16xf32>
    %cst_93 = arith.constant dense<0.000000e+00> : vector<16xf32>
    %168 = vector.multi_reduction <add>, %167, %cst_93 [1] : vector<16x16xf32> to vector<16xf32>
    %169 = vector.shape_cast %168 : vector<16xf32> to vector<16x1xf32>
    %cst_94 = arith.constant 1.600000e+01 : f32
    %170 = vector.broadcast %cst_94 : f32 to vector<16x1xf32>
    %171 = arith.divf %169, %170 : vector<16x1xf32>
    %172 = vector.broadcast %164 : vector<16x1xf32> to vector<16x16xf32>
    %173 = arith.subf %156, %172 : vector<16x16xf32>
    %cst_95 = arith.constant 9.99999974E-6 : f32
    %174 = vector.broadcast %cst_95 : f32 to vector<16x1xf32>
    %175 = arith.addf %171, %174 : vector<16x1xf32>
    %176 = math.rsqrt %175 : vector<16x1xf32>
    %177 = vector.broadcast %176 : vector<16x1xf32> to vector<16x16xf32>
    %178 = arith.mulf %173, %177 : vector<16x16xf32>
    %179 = vector.broadcast %158 : vector<1x16xf32> to vector<16x16xf32>
    %180 = arith.mulf %178, %179 : vector<16x16xf32>
    %181 = vector.broadcast %160 : vector<1x16xf32> to vector<16x16xf32>
    %182 = arith.addf %180, %181 : vector<16x16xf32>
    %c1_96 = arith.constant 1 : index
    %c0_97 = arith.constant 0 : index
    %c0_98 = arith.constant 0 : index
    %183 = vector.load %arg13[%c1_96, %c0_97, %c0_98] : memref<2x16x32xf32, #tpu.memory_space<vmem>>, vector<1x16x32xf32>
    %184 = vector.shape_cast %183 : vector<1x16x32xf32> to vector<16x32xf32>
    %cst_99 = arith.constant dense<0.000000e+00> : vector<16x32xf32>
    %185 = tpu.matmul %182, %184, %cst_99 {dimension_numbers = #tpu.dot_dimension_numbers<[1], [0], [0], [1], [0, 0, 1, 1], [], []>} : vector<16x16xf32>, vector<16x32xf32>, vector<16x32xf32> -> vector<16x32xf32>
    %c1_100 = arith.constant 1 : index
    %c0_101 = arith.constant 0 : index
    %c0_102 = arith.constant 0 : index
    %186 = vector.load %arg14[%c1_100, %c0_101, %c0_102] : memref<2x1x32xf32, #tpu.memory_space<vmem>>, vector<1x1x32xf32>
    %187 = vector.shape_cast %186 : vector<1x1x32xf32> to vector<1x32xf32>
    %188 = vector.broadcast %187 : vector<1x32xf32> to vector<16x32xf32>
    %189 = arith.addf %185, %188 : vector<16x32xf32>
    %cst_103 = arith.constant 0.000000e+00 : f32
    %190 = vector.broadcast %cst_103 : f32 to vector<16x32xf32>
    %191 = arith.maximumf %189, %190 : vector<16x32xf32>
    %c1_104 = arith.constant 1 : index
    %c0_105 = arith.constant 0 : index
    %c0_106 = arith.constant 0 : index
    %192 = vector.load %arg15[%c1_104, %c0_105, %c0_106] : memref<2x32x16xf32, #tpu.memory_space<vmem>>, vector<1x32x16xf32>
    %193 = vector.shape_cast %192 : vector<1x32x16xf32> to vector<32x16xf32>
    %cst_107 = arith.constant dense<0.000000e+00> : vector<16x16xf32>
    %194 = tpu.matmul %191, %193, %cst_107 {dimension_numbers = #tpu.dot_dimension_numbers<[1], [0], [0], [1], [0, 0, 1, 1], [], []>} : vector<16x32xf32>, vector<32x16xf32>, vector<16x16xf32> -> vector<16x16xf32>
    %c1_108 = arith.constant 1 : index
    %c0_109 = arith.constant 0 : index
    %c0_110 = arith.constant 0 : index
    %195 = vector.load %arg16[%c1_108, %c0_109, %c0_110] : memref<2x1x16xf32, #tpu.memory_space<vmem>>, vector<1x1x16xf32>
    %196 = vector.shape_cast %195 : vector<1x1x16xf32> to vector<1x16xf32>
    %197 = vector.broadcast %196 : vector<1x16xf32> to vector<16x16xf32>
    %198 = arith.addf %194, %197 : vector<16x16xf32>
    %199 = vector.shape_cast %198 : vector<16x16xf32> to vector<2x8x16xf32>
    %200 = arith.addf %155, %199 : vector<2x8x16xf32>
    %201 = vector.shape_cast %200 : vector<2x8x16xf32> to vector<16x16xf32>
    %c0_111 = arith.constant 0 : index
    %c0_112 = arith.constant 0 : index
    %202 = vector.load %arg17[%c0_111, %c0_112] : memref<1x16xf32, #tpu.memory_space<vmem>>, vector<1x16xf32>
    %c0_113 = arith.constant 0 : index
    %c0_114 = arith.constant 0 : index
    %203 = vector.load %arg18[%c0_113, %c0_114] : memref<1x16xf32, #tpu.memory_space<vmem>>, vector<1x16xf32>
    %cst_115 = arith.constant dense<0.000000e+00> : vector<16xf32>
    %204 = vector.multi_reduction <add>, %201, %cst_115 [1] : vector<16x16xf32> to vector<16xf32>
    %205 = vector.shape_cast %204 : vector<16xf32> to vector<16x1xf32>
    %cst_116 = arith.constant 1.600000e+01 : f32
    %206 = vector.broadcast %cst_116 : f32 to vector<16x1xf32>
    %207 = arith.divf %205, %206 : vector<16x1xf32>
    %208 = vector.broadcast %207 : vector<16x1xf32> to vector<16x16xf32>
    %209 = arith.subf %201, %208 : vector<16x16xf32>
    %210 = arith.mulf %209, %209 : vector<16x16xf32>
    %cst_117 = arith.constant dense<0.000000e+00> : vector<16xf32>
    %211 = vector.multi_reduction <add>, %210, %cst_117 [1] : vector<16x16xf32> to vector<16xf32>
    %212 = vector.shape_cast %211 : vector<16xf32> to vector<16x1xf32>
    %cst_118 = arith.constant 1.600000e+01 : f32
    %213 = vector.broadcast %cst_118 : f32 to vector<16x1xf32>
    %214 = arith.divf %212, %213 : vector<16x1xf32>
    %215 = vector.broadcast %207 : vector<16x1xf32> to vector<16x16xf32>
    %216 = arith.subf %201, %215 : vector<16x16xf32>
    %cst_119 = arith.constant 9.99999974E-6 : f32
    %217 = vector.broadcast %cst_119 : f32 to vector<16x1xf32>
    %218 = arith.addf %214, %217 : vector<16x1xf32>
    %219 = math.rsqrt %218 : vector<16x1xf32>
    %220 = vector.broadcast %219 : vector<16x1xf32> to vector<16x16xf32>
    %221 = arith.mulf %216, %220 : vector<16x16xf32>
    %222 = vector.broadcast %202 : vector<1x16xf32> to vector<16x16xf32>
    %223 = arith.mulf %221, %222 : vector<16x16xf32>
    %224 = vector.broadcast %203 : vector<1x16xf32> to vector<16x16xf32>
    %225 = arith.addf %223, %224 : vector<16x16xf32>
    %226 = vector.shape_cast %225 : vector<16x16xf32> to vector<2x8x16xf32>
    %227 = tpu.transpose %226, [0, 2, 1] : vector<2x8x16xf32> -> vector<2x16x8xf32>
    %cst_120 = arith.constant dense<0.000000e+00> : vector<2x16xf32>
    %228 = vector.multi_reduction <add>, %227, %cst_120 [2] : vector<2x16x8xf32> to vector<2x16xf32>
    %cst_121 = arith.constant 8.000000e+00 : f32
    %229 = vector.broadcast %cst_121 : f32 to vector<2x16xf32>
    %230 = arith.divf %228, %229 : vector<2x16xf32>
    %c0_122 = arith.constant 0 : index
    %c0_123 = arith.constant 0 : index
    %231 = vector.load %arg19[%c0_122, %c0_123] : memref<16x32xf32, #tpu.memory_space<vmem>>, vector<16x32xf32>
    %cst_124 = arith.constant dense<0.000000e+00> : vector<2x32xf32>
    %232 = tpu.matmul %230, %231, %cst_124 {dimension_numbers = #tpu.dot_dimension_numbers<[1], [0], [0], [1], [0, 0, 1, 1], [], []>} : vector<2x16xf32>, vector<16x32xf32>, vector<2x32xf32> -> vector<2x32xf32>
    %c0_125 = arith.constant 0 : index
    %c0_126 = arith.constant 0 : index
    %233 = vector.load %arg20[%c0_125, %c0_126] : memref<1x32xf32, #tpu.memory_space<vmem>>, vector<1x32xf32>
    %234 = vector.broadcast %233 : vector<1x32xf32> to vector<2x32xf32>
    %235 = arith.addf %232, %234 : vector<2x32xf32>
    %cst_127 = arith.constant 0.000000e+00 : f32
    %236 = vector.broadcast %cst_127 : f32 to vector<2x32xf32>
    %237 = arith.maximumf %235, %236 : vector<2x32xf32>
    %c0_128 = arith.constant 0 : index
    %c0_129 = arith.constant 0 : index
    %238 = vector.load %arg21[%c0_128, %c0_129] : memref<32x32xf32, #tpu.memory_space<vmem>>, vector<32x32xf32>
    %cst_130 = arith.constant dense<0.000000e+00> : vector<2x32xf32>
    %239 = tpu.matmul %237, %238, %cst_130 {dimension_numbers = #tpu.dot_dimension_numbers<[1], [0], [0], [1], [0, 0, 1, 1], [], []>} : vector<2x32xf32>, vector<32x32xf32>, vector<2x32xf32> -> vector<2x32xf32>
    %c0_131 = arith.constant 0 : index
    %c0_132 = arith.constant 0 : index
    %240 = vector.load %arg22[%c0_131, %c0_132] : memref<1x32xf32, #tpu.memory_space<vmem>>, vector<1x32xf32>
    %241 = vector.broadcast %240 : vector<1x32xf32> to vector<2x32xf32>
    %242 = arith.addf %239, %241 : vector<2x32xf32>
    %cst_133 = arith.constant 0.000000e+00 : f32
    %243 = vector.broadcast %cst_133 : f32 to vector<2x32xf32>
    %244 = arith.maximumf %242, %243 : vector<2x32xf32>
    %c0_134 = arith.constant 0 : index
    %c0_135 = arith.constant 0 : index
    %245 = vector.load %arg23[%c0_134, %c0_135] : memref<32x12xf32, #tpu.memory_space<vmem>>, vector<32x12xf32>
    %cst_136 = arith.constant dense<0.000000e+00> : vector<2x12xf32>
    %246 = tpu.matmul %244, %245, %cst_136 {dimension_numbers = #tpu.dot_dimension_numbers<[1], [0], [0], [1], [0, 0, 1, 1], [], []>} : vector<2x32xf32>, vector<32x12xf32>, vector<2x12xf32> -> vector<2x12xf32>
    %c0_137 = arith.constant 0 : index
    %c0_138 = arith.constant 0 : index
    %247 = vector.load %arg24[%c0_137, %c0_138] : memref<1x12xf32, #tpu.memory_space<vmem>>, vector<1x12xf32>
    %248 = vector.broadcast %247 : vector<1x12xf32> to vector<2x12xf32>
    %249 = arith.addf %246, %248 : vector<2x12xf32>
    %c0_139 = arith.constant 0 : index
    %c0_140 = arith.constant 0 : index
    %250 = vector.load %arg25[%c0_139, %c0_140] : memref<2x12xf32, #tpu.memory_space<vmem>>, vector<2x12xf32>
    tpu.vector_store %arg25[%c0_139, %c0_140], %249 {strides = array<i32>} : memref<2x12xf32, #tpu.memory_space<vmem>>, vector<2x12xf32>,
    return
  }
  func.func @transform_0(%arg0: i32) -> (i32, i32, i32) {
    %c0_i32 = arith.constant 0 : i32
    %c0_i32_0 = arith.constant 0 : i32
    %c0_i32_1 = arith.constant 0 : i32
    return %arg0, %c0_i32, %c0_i32_0 : i32, i32, i32
  }
  func.func @transform_1(%arg0: i32) -> (i32, i32) {
    %c0_i32 = arith.constant 0 : i32
    %c0_i32_0 = arith.constant 0 : i32
    %c0_i32_1 = arith.constant 0 : i32
    return %c0_i32, %c0_i32_0 : i32, i32
  }
  func.func @transform_2(%arg0: i32) -> (i32, i32) {
    %c0_i32 = arith.constant 0 : i32
    %c0_i32_0 = arith.constant 0 : i32
    %c0_i32_1 = arith.constant 0 : i32
    return %c0_i32, %c0_i32_0 : i32, i32
  }
  func.func @transform_3(%arg0: i32) -> (i32, i32) {
    %c0_i32 = arith.constant 0 : i32
    %c0_i32_0 = arith.constant 0 : i32
    %c0_i32_1 = arith.constant 0 : i32
    return %c0_i32, %c0_i32_0 : i32, i32
  }
  func.func @transform_4(%arg0: i32) -> (i32, i32, i32) {
    %c0_i32 = arith.constant 0 : i32
    %c0_i32_0 = arith.constant 0 : i32
    %c0_i32_1 = arith.constant 0 : i32
    %c0_i32_2 = arith.constant 0 : i32
    return %c0_i32, %c0_i32_0, %c0_i32_1 : i32, i32, i32
  }
  func.func @transform_5(%arg0: i32) -> (i32, i32, i32) {
    %c0_i32 = arith.constant 0 : i32
    %c0_i32_0 = arith.constant 0 : i32
    %c0_i32_1 = arith.constant 0 : i32
    %c0_i32_2 = arith.constant 0 : i32
    return %c0_i32, %c0_i32_0, %c0_i32_1 : i32, i32, i32
  }
  func.func @transform_6(%arg0: i32) -> (i32, i32, i32) {
    %c0_i32 = arith.constant 0 : i32
    %c0_i32_0 = arith.constant 0 : i32
    %c0_i32_1 = arith.constant 0 : i32
    %c0_i32_2 = arith.constant 0 : i32
    return %c0_i32, %c0_i32_0, %c0_i32_1 : i32, i32, i32
  }
  func.func @transform_7(%arg0: i32) -> (i32, i32, i32) {
    %c0_i32 = arith.constant 0 : i32
    %c0_i32_0 = arith.constant 0 : i32
    %c0_i32_1 = arith.constant 0 : i32
    %c0_i32_2 = arith.constant 0 : i32
    return %c0_i32, %c0_i32_0, %c0_i32_1 : i32, i32, i32
  }
  func.func @transform_8(%arg0: i32) -> (i32, i32, i32) {
    %c0_i32 = arith.constant 0 : i32
    %c0_i32_0 = arith.constant 0 : i32
    %c0_i32_1 = arith.constant 0 : i32
    %c0_i32_2 = arith.constant 0 : i32
    return %c0_i32, %c0_i32_0, %c0_i32_1 : i32, i32, i32
  }
  func.func @transform_9(%arg0: i32) -> (i32, i32, i32) {
    %c0_i32 = arith.constant 0 : i32
    %c0_i32_0 = arith.constant 0 : i32
    %c0_i32_1 = arith.constant 0 : i32
    %c0_i32_2 = arith.constant 0 : i32
    return %c0_i32, %c0_i32_0, %c0_i32_1 : i32, i32, i32
  }
  func.func @transform_10(%arg0: i32) -> (i32, i32, i32) {
    %c0_i32 = arith.constant 0 : i32
    %c0_i32_0 = arith.constant 0 : i32
    %c0_i32_1 = arith.constant 0 : i32
    %c0_i32_2 = arith.constant 0 : i32
    return %c0_i32, %c0_i32_0, %c0_i32_1 : i32, i32, i32
  }
  func.func @transform_11(%arg0: i32) -> (i32, i32, i32) {
    %c0_i32 = arith.constant 0 : i32
    %c0_i32_0 = arith.constant 0 : i32
    %c0_i32_1 = arith.constant 0 : i32
    %c0_i32_2 = arith.constant 0 : i32
    return %c0_i32, %c0_i32_0, %c0_i32_1 : i32, i32, i32
  }
  func.func @transform_12(%arg0: i32) -> (i32, i32, i32) {
    %c0_i32 = arith.constant 0 : i32
    %c0_i32_0 = arith.constant 0 : i32
    %c0_i32_1 = arith.constant 0 : i32
    %c0_i32_2 = arith.constant 0 : i32
    return %c0_i32, %c0_i32_0, %c0_i32_1 : i32, i32, i32
  }
  func.func @transform_13(%arg0: i32) -> (i32, i32, i32) {
    %c0_i32 = arith.constant 0 : i32
    %c0_i32_0 = arith.constant 0 : i32
    %c0_i32_1 = arith.constant 0 : i32
    %c0_i32_2 = arith.constant 0 : i32
    return %c0_i32, %c0_i32_0, %c0_i32_1 : i32, i32, i32
  }
  func.func @transform_14(%arg0: i32) -> (i32, i32, i32) {
    %c0_i32 = arith.constant 0 : i32
    %c0_i32_0 = arith.constant 0 : i32
    %c0_i32_1 = arith.constant 0 : i32
    %c0_i32_2 = arith.constant 0 : i32
    return %c0_i32, %c0_i32_0, %c0_i32_1 : i32, i32, i32
  }
  func.func @transform_15(%arg0: i32) -> (i32, i32, i32) {
    %c0_i32 = arith.constant 0 : i32
    %c0_i32_0 = arith.constant 0 : i32
    %c0_i32_1 = arith.constant 0 : i32
    %c0_i32_2 = arith.constant 0 : i32
    return %c0_i32, %c0_i32_0, %c0_i32_1 : i32, i32, i32
  }
  func.func @transform_16(%arg0: i32) -> (i32, i32) {
    %c0_i32 = arith.constant 0 : i32
    %c0_i32_0 = arith.constant 0 : i32
    %c0_i32_1 = arith.constant 0 : i32
    return %c0_i32, %c0_i32_0 : i32, i32
  }
  func.func @transform_17(%arg0: i32) -> (i32, i32) {
    %c0_i32 = arith.constant 0 : i32
    %c0_i32_0 = arith.constant 0 : i32
    %c0_i32_1 = arith.constant 0 : i32
    return %c0_i32, %c0_i32_0 : i32, i32
  }
  func.func @transform_18(%arg0: i32) -> (i32, i32) {
    %c0_i32 = arith.constant 0 : i32
    %c0_i32_0 = arith.constant 0 : i32
    %c0_i32_1 = arith.constant 0 : i32
    return %c0_i32, %c0_i32_0 : i32, i32
  }
  func.func @transform_19(%arg0: i32) -> (i32, i32) {
    %c0_i32 = arith.constant 0 : i32
    %c0_i32_0 = arith.constant 0 : i32
    %c0_i32_1 = arith.constant 0 : i32
    return %c0_i32, %c0_i32_0 : i32, i32
  }
  func.func @transform_20(%arg0: i32) -> (i32, i32) {
    %c0_i32 = arith.constant 0 : i32
    %c0_i32_0 = arith.constant 0 : i32
    %c0_i32_1 = arith.constant 0 : i32
    return %c0_i32, %c0_i32_0 : i32, i32
  }
  func.func @transform_21(%arg0: i32) -> (i32, i32) {
    %c0_i32 = arith.constant 0 : i32
    %c0_i32_0 = arith.constant 0 : i32
    %c0_i32_1 = arith.constant 0 : i32
    return %c0_i32, %c0_i32_0 : i32, i32
  }
  func.func @transform_22(%arg0: i32) -> (i32, i32) {
    %c0_i32 = arith.constant 0 : i32
    %c0_i32_0 = arith.constant 0 : i32
    %c0_i32_1 = arith.constant 0 : i32
    return %c0_i32, %c0_i32_0 : i32, i32
  }
  func.func @transform_23(%arg0: i32) -> (i32, i32) {
    %c0_i32 = arith.constant 0 : i32
    %c0_i32_0 = arith.constant 0 : i32
    %c0_i32_1 = arith.constant 0 : i32
    return %c0_i32, %c0_i32_0 : i32, i32
  }
  func.func @transform_24(%arg0: i32) -> (i32, i32) {
    %c0_i32 = arith.constant 0 : i32
    %c0_i32_0 = arith.constant 0 : i32
    return %arg0, %c0_i32 : i32, i32
  }
}

</mosaic_0001>

<llo_original>
// kernel: tpu_custom_call.1
$region0: #{tpu_custom_call.1}
  #allocation0 [shape = 'u32[]', space=smem, size = 0x4, offset = 0x4, fixed_abs, tag = 'smem constant byte address 0x4 - core index']
  #allocation1 [shape = 'u32[144,128]{1,0:T(1,128)}', space=vmem, size = 0x12000, scoped, tag = 'internal scratch']
  %s0 = inlined_call_operand.vmem [shape: f32[2,16,32], index: 0, kind: input, shape index: {}]
  %s1 = inlined_call_operand.vmem [shape: f32[16,32], index: 1, kind: input, shape index: {}]
  %s2 = inlined_call_operand.vmem [shape: f32[32,8], index: 2, kind: input, shape index: {}]
  %s3 = inlined_call_operand.vmem [shape: f32[1,8], index: 3, kind: input, shape index: {}]
  %s4 = inlined_call_operand.hbm [shape: f32[2,1,16], index: 4, kind: input, shape index: {}]
  %s5 = inlined_call_operand.hbm [shape: f32[2,1,16], index: 5, kind: input, shape index: {}]
  %s6 = inlined_call_operand.vmem [shape: f32[2,8,8], index: 6, kind: input, shape index: {}]
  %s7 = inlined_call_operand.hbm [shape: f32[2,1,8], index: 7, kind: input, shape index: {}]
  %s8 = inlined_call_operand.vmem [shape: f32[2,8,8], index: 8, kind: input, shape index: {}]
  %s9 = inlined_call_operand.hbm [shape: f32[2,1,8], index: 9, kind: input, shape index: {}]
  %s10 = inlined_call_operand.hbm [shape: f32[2,1,16], index: 10, kind: input, shape index: {}]
  %s11 = inlined_call_operand.hbm [shape: f32[2,1,16], index: 11, kind: input, shape index: {}]
  %s12 = inlined_call_operand.vmem [shape: f32[2,16,32], index: 12, kind: input, shape index: {}]
  %s13 = inlined_call_operand.hbm [shape: f32[2,1,32], index: 13, kind: input, shape index: {}]
  %s14 = inlined_call_operand.vmem [shape: f32[2,32,16], index: 14, kind: input, shape index: {}]
  %s15 = inlined_call_operand.hbm [shape: f32[2,1,16], index: 15, kind: input, shape index: {}]
  %s16 = inlined_call_operand.vmem [shape: f32[1,16], index: 16, kind: input, shape index: {}]
  %s17 = inlined_call_operand.vmem [shape: f32[1,16], index: 17, kind: input, shape index: {}]
  %s18 = inlined_call_operand.vmem [shape: f32[16,32], index: 18, kind: input, shape index: {}]
  %s19 = inlined_call_operand.vmem [shape: f32[1,32], index: 19, kind: input, shape index: {}]
  %s20 = inlined_call_operand.vmem [shape: f32[32,32], index: 20, kind: input, shape index: {}]
  %s21 = inlined_call_operand.vmem [shape: f32[1,32], index: 21, kind: input, shape index: {}]
  %s22 = inlined_call_operand.vmem [shape: f32[32,12], index: 22, kind: input, shape index: {}]
  %s23 = inlined_call_operand.vmem [shape: f32[1,12], index: 23, kind: input, shape index: {}]
  %s24 = inlined_call_operand.hbm [shape: f32[2,12], index: 24, kind: output, shape index: {}]
  %s25 = sld [smem:[#allocation0]]
  $region138: #{tpu_custom_call.1} parent=0
    _
  %s27 = ssub.s32 1, %s25
  %s28 = scalar_select 0, %s27, %s25
  $region1: #{tpu_custom_call.1} parent=0
    #allocation2 [shape = 'u8[1024]{0}', space=vmem, size = 0x400, scoped, tag = 'input window, operand 4, single buffered']
    #allocation3 [shape = 's32[1]{0}', space=sflag, size = 0x4, scoped, tag = 'scoped memory for tpu_custom_call.1']
    #allocation4 [shape = 's32[1]{0}', space=sflag, size = 0x4, scoped, tag = 'scoped memory for tpu_custom_call.1']
    #allocation5 [shape = 'u8[1024]{0}', space=vmem, size = 0x400, scoped, tag = 'input window, operand 5, single buffered']
    #allocation6 [shape = 's32[1]{0}', space=sflag, size = 0x4, scoped, tag = 'scoped memory for tpu_custom_call.1']
    #allocation7 [shape = 'u8[1024]{0}', space=vmem, size = 0x400, scoped, tag = 'input window, operand 7, single buffered']
    #allocation8 [shape = 'u8[1024]{0}', space=vmem, size = 0x400, scoped, tag = 'input window, operand 9, single buffered']
    #allocation9 [shape = 's32[1]{0}', space=sflag, size = 0x4, scoped, tag = 'scoped memory for tpu_custom_call.1']
    #allocation10 [shape = 'u8[1024]{0}', space=vmem, size = 0x400, scoped, tag = 'input window, operand 10, single buffered']
    #allocation11 [shape = 'u8[1024]{0}', space=vmem, size = 0x400, scoped, tag = 'input window, operand 11, single buffered']
    #allocation12 [shape = 's32[1]{0}', space=sflag, size = 0x4, scoped, tag = 'scoped memory for tpu_custom_call.1']
    #allocation13 [shape = 'u8[1024]{0}', space=vmem, size = 0x400, scoped, tag = 'input window, operand 13, single buffered']
    #allocation14 [shape = 'u8[1024]{0}', space=vmem, size = 0x400, scoped, tag = 'input window, operand 15, single buffered']
    #allocation15 [shape = 's32[1]{0}', space=sflag, size = 0x4, scoped, tag = 'scoped memory for tpu_custom_call.1']
    #allocation16 [shape = 'u8[1024]{0}', space=vmem, size = 0x400, scoped, tag = 'output window, operand 0, single buffered']
    %29 = vsyncpa [#allocation3], 0
    %30 = vsyncpa [#allocation6], 0
    %31 = vsyncpa [#allocation9], 0
    %32 = vsyncpa [#allocation12], 0
    %33 = vsyncpa [#allocation15], 0
    %34 = vsyncpa [#allocation4], 0
    // Predicated region
    $region2: #{tpu_custom_call.1} parent=1 // pred_check
      _
    $region3: #{tpu_custom_call.1} parent=1 // pred_check_branch
      %36 = sbr.rel (0) target = $region5
    $region4: #{tpu_custom_call.1} parent=1 // pred_region
      _
    $region5: #{tpu_custom_call.1} parent=1 // pred_fallthru
      _
    // Predicated region
    $region6: #{tpu_custom_call.1} parent=1 // pred_check
      _
    $region7: #{tpu_custom_call.1} parent=1 // pred_check_branch
      %38 = sbr.rel (0) target = $region9
    $region8: #{tpu_custom_call.1} parent=1 // pred_region
      _
    $region9: #{tpu_custom_call.1} parent=1 // pred_fallthru
      _
    // Predicated region
    $region10: #{tpu_custom_call.1} parent=1 // pred_check
      _
    $region11: #{tpu_custom_call.1} parent=1 // pred_check_branch
      %40 = sbr.rel (0) target = $region13
    $region12: #{tpu_custom_call.1} parent=1 // pred_region
      _
    $region13: #{tpu_custom_call.1} parent=1 // pred_fallthru
      _
    // Predicated region
    $region14: #{tpu_custom_call.1} parent=1 // pred_check
      _
    $region15: #{tpu_custom_call.1} parent=1 // pred_check_branch
      %42 = sbr.rel (0) target = $region17
    $region16: #{tpu_custom_call.1} parent=1 // pred_region
      _
    $region17: #{tpu_custom_call.1} parent=1 // pred_fallthru
      _
    // Predicated region
    $region18: #{tpu_custom_call.1} parent=1 // pred_check
      _
    $region19: #{tpu_custom_call.1} parent=1 // pred_check_branch
      %44 = sbr.rel (0) target = $region21
    $region20: #{tpu_custom_call.1} parent=1 // pred_region
      %s46 = ssub.s32 32, 32
      %47 = vsyncadd [#allocation3], %s46
      %s48 = sshll.u32 [#allocation2], 4
      %s49 = int_to_ptr.vmem [resolvable:$true] %s48
      %54 = dma.hbm_to_vmem [thread:$0]  %s4, 32, %s49, [#allocation3], 16, 16, 1
    $region21: #{tpu_custom_call.1} parent=1 // pred_fallthru
      _
    // Predicated region
    $region22: #{tpu_custom_call.1} parent=1 // pred_check
      _
    $region23: #{tpu_custom_call.1} parent=1 // pred_check_branch
      %56 = sbr.rel (0) target = $region25
    $region24: #{tpu_custom_call.1} parent=1 // pred_region
      %s58 = ssub.s32 32, 32
      %59 = vsyncadd [#allocation6], %s58
      %s60 = sshll.u32 [#allocation5], 4
      %s61 = int_to_ptr.vmem [resolvable:$true] %s60
      %66 = dma.hbm_to_vmem [thread:$0]  %s5, 32, %s61, [#allocation6], 16, 16, 1
    $region25: #{tpu_custom_call.1} parent=1 // pred_fallthru
      _
    // Predicated region
    $region26: #{tpu_custom_call.1} parent=1 // pred_check
      _
    $region27: #{tpu_custom_call.1} parent=1 // pred_check_branch
      %68 = sbr.rel (0) target = $region29
    $region28: #{tpu_custom_call.1} parent=1 // pred_region
      _
    $region29: #{tpu_custom_call.1} parent=1 // pred_fallthru
      _
    // Predicated region
    $region30: #{tpu_custom_call.1} parent=1 // pred_check
      _
    $region31: #{tpu_custom_call.1} parent=1 // pred_check_branch
      %70 = sbr.rel (0) target = $region33
    $region32: #{tpu_custom_call.1} parent=1 // pred_region
      %s72 = ssub.s32 32, 32
      %73 = vsyncadd [#allocation6], %s72
      %s74 = sshll.u32 [#allocation7], 4
      %s75 = int_to_ptr.vmem [resolvable:$true] %s74
      %80 = dma.hbm_to_vmem [thread:$0]  %s7, 32, %s75, [#allocation6], 16, 16, 1
    $region33: #{tpu_custom_call.1} parent=1 // pred_fallthru
      _
    // Predicated region
    $region34: #{tpu_custom_call.1} parent=1 // pred_check
      _
    $region35: #{tpu_custom_call.1} parent=1 // pred_check_branch
      %82 = sbr.rel (0) target = $region37
    $region36: #{tpu_custom_call.1} parent=1 // pred_region
      _
    $region37: #{tpu_custom_call.1} parent=1 // pred_fallthru
      _
    // Predicated region
    $region38: #{tpu_custom_call.1} parent=1 // pred_check
      _
    $region39: #{tpu_custom_call.1} parent=1 // pred_check_branch
      %84 = sbr.rel (0) target = $region41
    $region40: #{tpu_custom_call.1} parent=1 // pred_region
      %s86 = ssub.s32 32, 32
      %87 = vsyncadd [#allocation9], %s86
      %s88 = sshll.u32 [#allocation8], 4
      %s89 = int_to_ptr.vmem [resolvable:$true] %s88
      %94 = dma.hbm_to_vmem [thread:$0]  %s9, 32, %s89, [#allocation9], 16, 16, 1
    $region41: #{tpu_custom_call.1} parent=1 // pred_fallthru
      _
    // Predicated region
    $region42: #{tpu_custom_call.1} parent=1 // pred_check
      _
    $region43: #{tpu_custom_call.1} parent=1 // pred_check_branch
      %96 = sbr.rel (0) target = $region45
    $region44: #{tpu_custom_call.1} parent=1 // pred_region
      %s98 = ssub.s32 32, 32
      %99 = vsyncadd [#allocation9], %s98
      %s100 = sshll.u32 [#allocation10], 4
      %s101 = int_to_ptr.vmem [resolvable:$true] %s100
      %106 = dma.hbm_to_vmem [thread:$0]  %s10, 32, %s101, [#allocation9], 16, 16, 1
    $region45: #{tpu_custom_call.1} parent=1 // pred_fallthru
      _
    // Predicated region
    $region46: #{tpu_custom_call.1} parent=1 // pred_check
      _
    $region47: #{tpu_custom_call.1} parent=1 // pred_check_branch
      %108 = sbr.rel (0) target = $region49
    $region48: #{tpu_custom_call.1} parent=1 // pred_region
      %s110 = ssub.s32 32, 32
      %111 = vsyncadd [#allocation12], %s110
      %s112 = sshll.u32 [#allocation11], 4
      %s113 = int_to_ptr.vmem [resolvable:$true] %s112
      %118 = dma.hbm_to_vmem [thread:$0]  %s11, 32, %s113, [#allocation12], 16, 16, 1
    $region49: #{tpu_custom_call.1} parent=1 // pred_fallthru
      _
    // Predicated region
    $region50: #{tpu_custom_call.1} parent=1 // pred_check
      _
    $region51: #{tpu_custom_call.1} parent=1 // pred_check_branch
      %120 = sbr.rel (0) target = $region53
    $region52: #{tpu_custom_call.1} parent=1 // pred_region
      _
    $region53: #{tpu_custom_call.1} parent=1 // pred_fallthru
      _
    // Predicated region
    $region54: #{tpu_custom_call.1} parent=1 // pred_check
      _
    $region55: #{tpu_custom_call.1} parent=1 // pred_check_branch
      %122 = sbr.rel (0) target = $region57
    $region56: #{tpu_custom_call.1} parent=1 // pred_region
      %s124 = ssub.s32 32, 32
      %125 = vsyncadd [#allocation12], %s124
      %s126 = sshll.u32 [#allocation13], 4
      %s127 = int_to_ptr.vmem [resolvable:$true] %s126
      %132 = dma.hbm_to_vmem [thread:$0]  %s13, 32, %s127, [#allocation12], 16, 16, 1
    $region57: #{tpu_custom_call.1} parent=1 // pred_fallthru
      _
    // Predicated region
    $region58: #{tpu_custom_call.1} parent=1 // pred_check
      _
    $region59: #{tpu_custom_call.1} parent=1 // pred_check_branch
      %134 = sbr.rel (0) target = $region61
    $region60: #{tpu_custom_call.1} parent=1 // pred_region
      _
    $region61: #{tpu_custom_call.1} parent=1 // pred_fallthru
      _
    // Predicated region
    $region62: #{tpu_custom_call.1} parent=1 // pred_check
      _
    $region63: #{tpu_custom_call.1} parent=1 // pred_check_branch
      %136 = sbr.rel (0) target = $region65
    $region64: #{tpu_custom_call.1} parent=1 // pred_region
      %s138 = ssub.s32 32, 32
      %139 = vsyncadd [#allocation15], %s138
      %s140 = sshll.u32 [#allocation14], 4
      %s141 = int_to_ptr.vmem [resolvable:$true] %s140
      %146 = dma.hbm_to_vmem [thread:$0]  %s15, 32, %s141, [#allocation15], 16, 16, 1
    $region65: #{tpu_custom_call.1} parent=1 // pred_fallthru
      _
    // Predicated region
    $region66: #{tpu_custom_call.1} parent=1 // pred_check
      _
    $region67: #{tpu_custom_call.1} parent=1 // pred_check_branch
      %148 = sbr.rel (0) target = $region69
    $region68: #{tpu_custom_call.1} parent=1 // pred_region
      _
    $region69: #{tpu_custom_call.1} parent=1 // pred_fallthru
      _
    // Predicated region
    $region70: #{tpu_custom_call.1} parent=1 // pred_check
      _
    $region71: #{tpu_custom_call.1} parent=1 // pred_check_branch
      %150 = sbr.rel (0) target = $region73
    $region72: #{tpu_custom_call.1} parent=1 // pred_region
      _
    $region73: #{tpu_custom_call.1} parent=1 // pred_fallthru
      _
    // Predicated region
    $region74: #{tpu_custom_call.1} parent=1 // pred_check
      _
    $region75: #{tpu_custom_call.1} parent=1 // pred_check_branch
      %152 = sbr.rel (0) target = $region77
    $region76: #{tpu_custom_call.1} parent=1 // pred_region
      _
    $region77: #{tpu_custom_call.1} parent=1 // pred_fallthru
      _
    // Predicated region
    $region78: #{tpu_custom_call.1} parent=1 // pred_check
      _
    $region79: #{tpu_custom_call.1} parent=1 // pred_check_branch
      %154 = sbr.rel (0) target = $region81
    $region80: #{tpu_custom_call.1} parent=1 // pred_region
      _
    $region81: #{tpu_custom_call.1} parent=1 // pred_fallthru
      _
    // Predicated region
    $region82: #{tpu_custom_call.1} parent=1 // pred_check
      _
    $region83: #{tpu_custom_call.1} parent=1 // pred_check_branch
      %156 = sbr.rel (0) target = $region85
    $region84: #{tpu_custom_call.1} parent=1 // pred_region
      _
    $region85: #{tpu_custom_call.1} parent=1 // pred_fallthru
      _
    // Predicated region
    $region86: #{tpu_custom_call.1} parent=1 // pred_check
      _
    $region87: #{tpu_custom_call.1} parent=1 // pred_check_branch
      %158 = sbr.rel (0) target = $region89
    $region88: #{tpu_custom_call.1} parent=1 // pred_region
      _
    $region89: #{tpu_custom_call.1} parent=1 // pred_fallthru
      _
    // Predicated region
    $region90: #{tpu_custom_call.1} parent=1 // pred_check
      _
    $region91: #{tpu_custom_call.1} parent=1 // pred_check_branch
      %160 = sbr.rel (0) target = $region93
    $region92: #{tpu_custom_call.1} parent=1 // pred_region
      _
    $region93: #{tpu_custom_call.1} parent=1 // pred_fallthru
      _
    // Predicated region
    $region94: #{tpu_custom_call.1} parent=1 // pred_check
      _
    $region95: #{tpu_custom_call.1} parent=1 // pred_check_branch
      %162 = sbr.rel (0) target = $region97
    $region96: #{tpu_custom_call.1} parent=1 // pred_region
      _
    $region97: #{tpu_custom_call.1} parent=1 // pred_fallthru
      _
    // Predicated region
    $region98: #{tpu_custom_call.1} parent=1 // pred_check
      _
    $region99: #{tpu_custom_call.1} parent=1 // pred_check_branch
      %164 = sbr.rel (0) target = $region101
    $region100: #{tpu_custom_call.1} parent=1 // pred_region
      %165 = dma.done [#allocation3], 32
    $region101: #{tpu_custom_call.1} parent=1 // pred_fallthru
      _
    // Predicated region
    $region102: #{tpu_custom_call.1} parent=1 // pred_check
      _
    $region103: #{tpu_custom_call.1} parent=1 // pred_check_branch
      %167 = sbr.rel (0) target = $region105
    $region104: #{tpu_custom_call.1} parent=1 // pred_region
      %168 = dma.done [#allocation6], 32
    $region105: #{tpu_custom_call.1} parent=1 // pred_fallthru
      _
    // Predicated region
    $region106: #{tpu_custom_call.1} parent=1 // pred_check
      _
    $region107: #{tpu_custom_call.1} parent=1 // pred_check_branch
      %170 = sbr.rel (0) target = $region109
    $region108: #{tpu_custom_call.1} parent=1 // pred_region
      %171 = dma.done [#allocation6], 32
    $region109: #{tpu_custom_call.1} parent=1 // pred_fallthru
      _
    // Predicated region
    $region110: #{tpu_custom_call.1} parent=1 // pred_check
      _
    $region111: #{tpu_custom_call.1} parent=1 // pred_check_branch
      %173 = sbr.rel (0) target = $region113
    $region112: #{tpu_custom_call.1} parent=1 // pred_region
      %174 = dma.done [#allocation9], 32
    $region113: #{tpu_custom_call.1} parent=1 // pred_fallthru
      _
    // Predicated region
    $region114: #{tpu_custom_call.1} parent=1 // pred_check
      _
    $region115: #{tpu_custom_call.1} parent=1 // pred_check_branch
      %176 = sbr.rel (0) target = $region117
    $region116: #{tpu_custom_call.1} parent=1 // pred_region
      %177 = dma.done [#allocation9], 32
    $region117: #{tpu_custom_call.1} parent=1 // pred_fallthru
      _
    // Predicated region
    $region118: #{tpu_custom_call.1} parent=1 // pred_check
      _
    $region119: #{tpu_custom_call.1} parent=1 // pred_check_branch
      %179 = sbr.rel (0) target = $region121
    $region120: #{tpu_custom_call.1} parent=1 // pred_region
      %180 = dma.done [#allocation12], 32
    $region121: #{tpu_custom_call.1} parent=1 // pred_fallthru
      _
    // Predicated region
    $region122: #{tpu_custom_call.1} parent=1 // pred_check
      _
    $region123: #{tpu_custom_call.1} parent=1 // pred_check_branch
      %182 = sbr.rel (0) target = $region125
    $region124: #{tpu_custom_call.1} parent=1 // pred_region
      %183 = dma.done [#allocation12], 32
    $region125: #{tpu_custom_call.1} parent=1 // pred_fallthru
      _
    // Predicated region
    $region126: #{tpu_custom_call.1} parent=1 // pred_check
      _
    $region127: #{tpu_custom_call.1} parent=1 // pred_check_branch
      %185 = sbr.rel (0) target = $region129
    $region128: #{tpu_custom_call.1} parent=1 // pred_region
      %186 = dma.done [#allocation15], 32
    $region129: #{tpu_custom_call.1} parent=1 // pred_fallthru
      _
    %v187 = vld [vmem:[%s0] sm:$0xff]
    %v188 = vld [vmem:[%s0 + $0x8] sm:$0xff]
    %v189 = vld [vmem:[%s0 + $0x10] sm:$0xff]
    %v190 = vld [vmem:[%s0 + $0x18] sm:$0xff]
    %v191 = vld [vmem:[%s1] sm:$0xff]
    %v192 = vld [vmem:[%s1 + $0x8] sm:$0xff]
    %v193 = vmul.f32 %v187, %v191
    %v194 = vmul.f32 %v188, %v192
    %v195 = vmul.f32 %v189, %v191
    %v196 = vmul.f32 %v190, %v192
    %v197 = vld [vmem:[%s2] sm:$0xff]
    %v198 = vld [vmem:[%s2 + $0x8] sm:$0xff]
    %v199 = vld [vmem:[%s2 + $0x10] sm:$0xff]
    %v200 = vld [vmem:[%s2 + $0x18] sm:$0xff]
    %v201 = vld [vmem:[%s3] sm:$0x1]
    %v203 = vlaneseq
    %v204 = vshrl.u32 %v203, 7
    %v205 = vsub.s32 0, %v204
    %v206 = vrot.slane %v201, %v205
    %vm208 = vcmask 261120
    %v210 = vsel %vm208, %v193, 0
    %v213 = vsel %vm208, %v194, 0
    %v216 = vsel %vm208, %v195, 0
    %v219 = vsel %vm208, %v196, 0
    %221 = vmatprep.subr.mxu0 0.0
    %222 = vmatpush1.msra.mxu0 0.0
    %223 = vmatprep.subr.mxu0 0.0
    %224 = vmatpush1.msra.mxu0 0.0
    %225 = vmatprep.subr.mxu0 0.0
    %226 = vmatpush1.msra.mxu0 0.0
    %227 = vmatprep.subr.mxu0 0.0
    %228 = vmatpush1.msra.mxu0 0.0
    %229 = vmatprep.subr.mxu0 0.0
    %230 = vmatpush1.msra.mxu0 0.0
    %231 = vmatprep.subr.mxu0 0.0
    %232 = vmatpush1.msra.mxu0 0.0
    %233 = vmatprep.subr.mxu0 0.0
    %234 = vmatpush1.msra.mxu0 0.0
    %235 = vmatprep.subr.mxu0 0.0
    %236 = vmatpush1.msra.mxu0 0.0
    %237 = vmatprep.subr.mxu0 0.0
    %238 = vmatpush1.msra.mxu0 0.0
    %239 = vmatprep.subr.mxu0 0.0
    %240 = vmatpush1.msra.mxu0 0.0
    %241 = vmatprep.subr.mxu0 0.0
    %242 = vmatpush1.msra.mxu0 0.0
    %243 = vmatprep.subr.mxu0 0.0
    %244 = vmatpush1.msra.mxu0 0.0
    %245 = vmatprep.subr.mxu0 0.0
    %246 = vmatpush1.msra.mxu0 %v200
    %247 = vmatprep.subr.mxu0 0.0
    %248 = vmatpush1.msra.mxu0 %v199
    %249 = vmatprep.subr.mxu0 0.0
    %250 = vmatpush1.msra.mxu0 %v198
    %251 = vmatprep.subr.mxu0 0.0
    %252 = vmatpush1.msra.mxu0 %v197
    %253 = vmatprep.subr.mxu0 0.0
    %254 = vmatpush2.msra.mxu0 0.0
    %255 = vmatprep.subr.mxu0 0.0
    %256 = vmatpush2.msra.mxu0 0.0
    %257 = vmatprep.subr.mxu0 0.0
    %258 = vmatpush2.msra.mxu0 0.0
    %259 = vmatprep.subr.mxu0 0.0
    %260 = vmatpush2.msra.mxu0 0.0
    %261 = vmatprep.subr.mxu0 0.0
    %262 = vmatpush2.msra.mxu0 0.0
    %263 = vmatprep.subr.mxu0 0.0
    %264 = vmatpush2.msra.mxu0 0.0
    %265 = vmatprep.subr.mxu0 0.0
    %266 = vmatpush2.msra.mxu0 0.0
    %267 = vmatprep.subr.mxu0 0.0
    %268 = vmatpush2.msra.mxu0 0.0
    %269 = vmatprep.subr.mxu0 0.0
    %270 = vmatpush2.msra.mxu0 0.0
    %271 = vmatprep.subr.mxu0 0.0
    %272 = vmatpush2.msra.mxu0 0.0
    %273 = vmatprep.subr.mxu0 0.0
    %274 = vmatpush2.msra.mxu0 0.0
    %275 = vmatprep.subr.mxu0 0.0
    %276 = vmatpush2.msra.mxu0 0.0
    %277 = vmatprep.subr.mxu0 0.0
    %278 = vmatpush2.msra.mxu0 0.0
    %279 = vmatprep.subr.mxu0 0.0
    %280 = vmatpush2.msra.mxu0 0.0
    %281 = vmatprep.subr.mxu0 0.0
    %282 = vmatpush2.msra.mxu0 0.0
    %283 = vmatprep.subr.mxu0 0.0
    %284 = vmatpush2.msra.mxu0 0.0
    %285 = vmatprep.mubr.f32.mxu0 0.0
    %286 = vmatmul.mubr.f32.gmra.mxu0 %v210
    %v287 = vpop.f32.mrf.mxu0
    %v288 = vadd.f32 %v206, %v287
    %v289 = vpop.f32.mrf.mxu0
    %290 = vmatprep.mubr.f32.mxu0 0.0
    %291 = vmatmul.mubr.f32.gmra.mxu0 %v213
    %v292 = vpop.f32.mrf.mxu0
    %v293 = vadd.f32 %v206, %v292
    %v294 = vpop.f32.mrf.mxu0
    %295 = vmatprep.mubr.f32.mxu0 0.0
    %296 = vmatmul.mubr.f32.gmra.mxu0 %v216
    %v297 = vpop.f32.mrf.mxu0
    %v298 = vadd.f32 %v206, %v297
    %v299 = vpop.f32.mrf.mxu0
    %300 = vmatprep.mubr.f32.mxu0 0.0
    %301 = vmatmul.mubr.f32.gmra.mxu0 %v219
    %v302 = vpop.f32.mrf.mxu0
    %v303 = vadd.f32 %v206, %v302
    %v304 = vpop.f32.mrf.mxu0
    %305 = vdwg.mxu0
    %306 = vxpose.xlu0.b32.start [1/16] %v288, 128
    %307 = vxpose.xlu0.b32.cont [2/16] %v293, 128
    %308 = vxpose.xlu0.b32.cont [3/16] 0.0, 128
    %309 = vxpose.xlu0.b32.cont [4/16] 0.0, 128
    %310 = vxpose.xlu0.b32.cont [5/16] 0.0, 128
    %311 = vxpose.xlu0.b32.cont [6/16] 0.0, 128
    %312 = vxpose.xlu0.b32.cont [7/16] 0.0, 128
    %313 = vxpose.xlu0.b32.cont [8/16] 0.0, 128
    %314 = vxpose.xlu0.b32.cont [9/16] 0.0, 128
    %315 = vxpose.xlu0.b32.cont [10/16] 0.0, 128
    %316 = vxpose.xlu0.b32.cont [11/16] 0.0, 128
    %317 = vxpose.xlu0.b32.cont [12/16] 0.0, 128
    %318 = vxpose.xlu0.b32.cont [13/16] 0.0, 128
    %319 = vxpose.xlu0.b32.cont [14/16] 0.0, 128
    %320 = vxpose.xlu0.b32.cont [15/16] 0.0, 128
    %321 = vxpose.xlu0.b32.end [16/16] 0.0, 128
    %v322 = vpop.trf.xlu0
    %v323 = vpop.trf.xlu0
    %v324 = vpop.trf.xlu0
    %v325 = vpop.trf.xlu0
    %v326 = vpop.trf.xlu0
    %v327 = vpop.trf.xlu0
    %v328 = vpop.trf.xlu0
    %v329 = vpop.trf.xlu0
    %v330 = vpop.trf.xlu0
    %v331 = vpop.trf.xlu0
    %v332 = vpop.trf.xlu0
    %v333 = vpop.trf.xlu0
    %v334 = vpop.trf.xlu0
    %v335 = vpop.trf.xlu0
    %v336 = vpop.trf.xlu0
    %v337 = vpop.trf.xlu0
    %338 = vxpose.xlu0.b32.start [1/16] %v298, 128
    %339 = vxpose.xlu0.b32.cont [2/16] %v303, 128
    %340 = vxpose.xlu0.b32.cont [3/16] 0.0, 128
    %341 = vxpose.xlu0.b32.cont [4/16] 0.0, 128
    %342 = vxpose.xlu0.b32.cont [5/16] 0.0, 128
    %343 = vxpose.xlu0.b32.cont [6/16] 0.0, 128
    %344 = vxpose.xlu0.b32.cont [7/16] 0.0, 128
    %345 = vxpose.xlu0.b32.cont [8/16] 0.0, 128
    %346 = vxpose.xlu0.b32.cont [9/16] 0.0, 128
    %347 = vxpose.xlu0.b32.cont [10/16] 0.0, 128
    %348 = vxpose.xlu0.b32.cont [11/16] 0.0, 128
    %349 = vxpose.xlu0.b32.cont [12/16] 0.0, 128
    %350 = vxpose.xlu0.b32.cont [13/16] 0.0, 128
    %351 = vxpose.xlu0.b32.cont [14/16] 0.0, 128
    %352 = vxpose.xlu0.b32.cont [15/16] 0.0, 128
    %353 = vxpose.xlu0.b32.end [16/16] 0.0, 128
    %v354 = vpop.trf.xlu0
    %v355 = vpop.trf.xlu0
    %v356 = vpop.trf.xlu0
    %v357 = vpop.trf.xlu0
    %v358 = vpop.trf.xlu0
    %v359 = vpop.trf.xlu0
    %v360 = vpop.trf.xlu0
    %v361 = vpop.trf.xlu0
    %v362 = vpop.trf.xlu0
    %v363 = vpop.trf.xlu0
    %v364 = vpop.trf.xlu0
    %v365 = vpop.trf.xlu0
    %v366 = vpop.trf.xlu0
    %v367 = vpop.trf.xlu0
    %v368 = vpop.trf.xlu0
    %v369 = vpop.trf.xlu0
    %v370 = vld [vmem:[#allocation2] sm:$0x1]
    %v371 = vld [vmem:[#allocation5] sm:$0x1]
    %vm372 = vcmask 130048
    %v373 = vsel %vm372, %v322, 0.0
    %374 = vadd.xlane.f32.xlu0 %v373
    %v375 = vpop.xlane.xlu0 %374
    %v376 = vsel %vm372, %v354, 0.0
    %377 = vadd.xlane.f32.xlu0 %v376
    %v378 = vpop.xlane.xlu0 %377
    %v379 = vrcp.pop 16.0
    %v380 = vmul.f32 %v375, %v379
    %v381 = vmul.f32 %v378, %v379
    %v382 = vsub.f32 %v322, %v380
    %v383 = vsub.f32 %v354, %v381
    %v384 = vmul.f32 %v382, %v382
    %v385 = vmul.f32 %v383, %v383
    %v386 = vsel %vm372, %v384, 0.0
    %387 = vadd.xlane.f32.xlu0 %v386
    %v388 = vpop.xlane.xlu0 %387
    %v389 = vsel %vm372, %v385, 0.0
    %390 = vadd.xlane.f32.xlu0 %v389
    %v391 = vpop.xlane.xlu0 %390
    %v392 = vmul.f32 %v388, %v379
    %v393 = vmul.f32 %v391, %v379
    %v394 = vadd.f32 %v392, 1e-05
    %v395 = vadd.f32 %v393, 1e-05
    %v396 = vrsqrt.pop %v394
    %v397 = vrsqrt.pop %v395
    %v398 = vmul.f32 %v382, %v396
    %v399 = vmul.f32 %v383, %v397
    %v401 = vlaneseq
    %v402 = vshrl.u32 %v401, 7
    %v403 = vsub.s32 0, %v402
    %v404 = vrot.slane %v370, %v403
    %v406 = vmul.f32 %v398, %v404
    %v407 = vmul.f32 %v399, %v404
    %v409 = vlaneseq
    %v410 = vshrl.u32 %v409, 7
    %v411 = vsub.s32 0, %v410
    %v412 = vrot.slane %v371, %v411
    %v414 = vadd.f32 %v406, %v412
    %v415 = vadd.f32 %v407, %v412
    %416 = vxpose.xlu0.b32.start [1/16] %v414, 128
    %417 = vxpose.xlu0.b32.cont [2/16] 0.0, 128
    %418 = vxpose.xlu0.b32.cont [3/16] 0.0, 128
    %419 = vxpose.xlu0.b32.cont [4/16] 0.0, 128
    %420 = vxpose.xlu0.b32.cont [5/16] 0.0, 128
    %421 = vxpose.xlu0.b32.cont [6/16] 0.0, 128
    %422 = vxpose.xlu0.b32.cont [7/16] 0.0, 128
    %423 = vxpose.xlu0.b32.cont [8/16] 0.0, 128
    %424 = vxpose.xlu0.b32.cont [9/16] 0.0, 128
    %425 = vxpose.xlu0.b32.cont [10/16] 0.0, 128
    %426 = vxpose.xlu0.b32.cont [11/16] 0.0, 128
    %427 = vxpose.xlu0.b32.cont [12/16] 0.0, 128
    %428 = vxpose.xlu0.b32.cont [13/16] 0.0, 128
    %429 = vxpose.xlu0.b32.cont [14/16] 0.0, 128
    %430 = vxpose.xlu0.b32.cont [15/16] 0.0, 128
    %431 = vxpose.xlu0.b32.end [16/16] 0.0, 128
    %v432 = vpop.trf.xlu0
    %v433 = vpop.trf.xlu0
    %v434 = vpop.trf.xlu0
    %v435 = vpop.trf.xlu0
    %v436 = vpop.trf.xlu0
    %v437 = vpop.trf.xlu0
    %v438 = vpop.trf.xlu0
    %v439 = vpop.trf.xlu0
    %v440 = vpop.trf.xlu0
    %v441 = vpop.trf.xlu0
    %v442 = vpop.trf.xlu0
    %v443 = vpop.trf.xlu0
    %v444 = vpop.trf.xlu0
    %v445 = vpop.trf.xlu0
    %v446 = vpop.trf.xlu0
    %v447 = vpop.trf.xlu0
    %448 = vxpose.xlu0.b32.start [1/16] %v415, 128
    %449 = vxpose.xlu0.b32.cont [2/16] 0.0, 128
    %450 = vxpose.xlu0.b32.cont [3/16] 0.0, 128
    %451 = vxpose.xlu0.b32.cont [4/16] 0.0, 128
    %452 = vxpose.xlu0.b32.cont [5/16] 0.0, 128
    %453 = vxpose.xlu0.b32.cont [6/16] 0.0, 128
    %454 = vxpose.xlu0.b32.cont [7/16] 0.0, 128
    %455 = vxpose.xlu0.b32.cont [8/16] 0.0, 128
    %456 = vxpose.xlu0.b32.cont [9/16] 0.0, 128
    %457 = vxpose.xlu0.b32.cont [10/16] 0.0, 128
    %458 = vxpose.xlu0.b32.cont [11/16] 0.0, 128
    %459 = vxpose.xlu0.b32.cont [12/16] 0.0, 128
    %460 = vxpose.xlu0.b32.cont [13/16] 0.0, 128
    %461 = vxpose.xlu0.b32.cont [14/16] 0.0, 128
    %462 = vxpose.xlu0.b32.cont [15/16] 0.0, 128
    %463 = vxpose.xlu0.b32.end [16/16] 0.0, 128
    %v464 = vpop.trf.xlu0
    %v465 = vpop.trf.xlu0
    %v466 = vpop.trf.xlu0
    %v467 = vpop.trf.xlu0
    %v468 = vpop.trf.xlu0
    %v469 = vpop.trf.xlu0
    %v470 = vpop.trf.xlu0
    %v471 = vpop.trf.xlu0
    %v472 = vpop.trf.xlu0
    %v473 = vpop.trf.xlu0
    %v474 = vpop.trf.xlu0
    %v475 = vpop.trf.xlu0
    %v476 = vpop.trf.xlu0
    %v477 = vpop.trf.xlu0
    %v478 = vpop.trf.xlu0
    %v479 = vpop.trf.xlu0
    %v480 = vld [vmem:[%s6] sm:$0xff]
    %v481 = vld [vmem:[#allocation7] sm:$0x1]
    %v483 = vlaneseq
    %v484 = vshrl.u32 %v483, 7
    %v485 = vsub.s32 0, %v484
    %v486 = vrot.slane %v481, %v485
    %vm488 = vcmask 64512
    %v490 = vsel %vm488, %v432, 0
    %v493 = vsel %vm488, %v433, 0
    %v496 = vsel %vm488, %v464, 0
    %v499 = vsel %vm488, %v465, 0
    %501 = vmatprep.subr.mxu0 0.0
    %502 = vmatpush1.msra.mxu0 0.0
    %503 = vmatprep.subr.mxu0 0.0
    %504 = vmatpush1.msra.mxu0 0.0
    %505 = vmatprep.subr.mxu0 0.0
    %506 = vmatpush1.msra.mxu0 0.0
    %507 = vmatprep.subr.mxu0 0.0
    %508 = vmatpush1.msra.mxu0 0.0
    %509 = vmatprep.subr.mxu0 0.0
    %510 = vmatpush1.msra.mxu0 0.0
    %511 = vmatprep.subr.mxu0 0.0
    %512 = vmatpush1.msra.mxu0 0.0
    %513 = vmatprep.subr.mxu0 0.0
    %514 = vmatpush1.msra.mxu0 0.0
    %515 = vmatprep.subr.mxu0 0.0
    %516 = vmatpush1.msra.mxu0 0.0
    %517 = vmatprep.subr.mxu0 0.0
    %518 = vmatpush1.msra.mxu0 0.0
    %519 = vmatprep.subr.mxu0 0.0
    %520 = vmatpush1.msra.mxu0 0.0
    %521 = vmatprep.subr.mxu0 0.0
    %522 = vmatpush1.msra.mxu0 0.0
    %523 = vmatprep.subr.mxu0 0.0
    %524 = vmatpush1.msra.mxu0 0.0
    %525 = vmatprep.subr.mxu0 0.0
    %526 = vmatpush1.msra.mxu0 0.0
    %527 = vmatprep.subr.mxu0 0.0
    %528 = vmatpush1.msra.mxu0 0.0
    %529 = vmatprep.subr.mxu0 0.0
    %530 = vmatpush1.msra.mxu0 0.0
    %531 = vmatprep.subr.mxu0 0.0
    %532 = vmatpush1.msra.mxu0 %v480
    %533 = vmatprep.subr.mxu0 0.0
    %534 = vmatpush2.msra.mxu0 0.0
    %535 = vmatprep.subr.mxu0 0.0
    %536 = vmatpush2.msra.mxu0 0.0
    %537 = vmatprep.subr.mxu0 0.0
    %538 = vmatpush2.msra.mxu0 0.0
    %539 = vmatprep.subr.mxu0 0.0
    %540 = vmatpush2.msra.mxu0 0.0
    %541 = vmatprep.subr.mxu0 0.0
    %542 = vmatpush2.msra.mxu0 0.0
    %543 = vmatprep.subr.mxu0 0.0
    %544 = vmatpush2.msra.mxu0 0.0
    %545 = vmatprep.subr.mxu0 0.0
    %546 = vmatpush2.msra.mxu0 0.0
    %547 = vmatprep.subr.mxu0 0.0
    %548 = vmatpush2.msra.mxu0 0.0
    %549 = vmatprep.subr.mxu0 0.0
    %550 = vmatpush2.msra.mxu0 0.0
    %551 = vmatprep.subr.mxu0 0.0
    %552 = vmatpush2.msra.mxu0 0.0
    %553 = vmatprep.subr.mxu0 0.0
    %554 = vmatpush2.msra.mxu0 0.0
    %555 = vmatprep.subr.mxu0 0.0
    %556 = vmatpush2.msra.mxu0 0.0
    %557 = vmatprep.subr.mxu0 0.0
    %558 = vmatpush2.msra.mxu0 0.0
    %559 = vmatprep.subr.mxu0 0.0
    %560 = vmatpush2.msra.mxu0 0.0
    %561 = vmatprep.subr.mxu0 0.0
    %562 = vmatpush2.msra.mxu0 0.0
    %563 = vmatprep.subr.mxu0 0.0
    %564 = vmatpush2.msra.mxu0 0.0
    %565 = vmatprep.mubr.f32.mxu0 0.0
    %566 = vmatmul.mubr.f32.gmra.mxu0 %v490
    %v567 = vpop.f32.mrf.mxu0
    %v568 = vadd.f32 %v486, %v567
    %v569 = vpop.f32.mrf.mxu0
    %570 = vmatprep.mubr.f32.mxu0 0.0
    %571 = vmatmul.mubr.f32.gmra.mxu0 %v493
    %v572 = vpop.f32.mrf.mxu0
    %v573 = vadd.f32 %v486, %v572
    %v574 = vpop.f32.mrf.mxu0
    %575 = vmatprep.mubr.f32.mxu0 0.0
    %576 = vmatmul.mubr.f32.gmra.mxu0 %v496
    %v577 = vpop.f32.mrf.mxu0
    %v578 = vadd.f32 %v486, %v577
    %v579 = vpop.f32.mrf.mxu0
    %580 = vmatprep.mubr.f32.mxu0 0.0
    %581 = vmatmul.mubr.f32.gmra.mxu0 %v499
    %v582 = vpop.f32.mrf.mxu0
    %v583 = vadd.f32 %v486, %v582
    %v584 = vpop.f32.mrf.mxu0
    %585 = vdwg.mxu0
    %v586 = vmax.f32 %v568, 0.0
    %v587 = vmax.f32 %v573, 0.0
    %v588 = vmax.f32 %v578, 0.0
    %v589 = vmax.f32 %v583, 0.0
    %v590 = vld [vmem:[%s8] sm:$0xff]
    %v591 = vld [vmem:[#allocation8] sm:$0x1]
    %v593 = vlaneseq
    %v594 = vshrl.u32 %v593, 7
    %v595 = vsub.s32 0, %v594
    %v596 = vrot.slane %v591, %v595
    %v599 = vsel %vm488, %v586, 0
    %v602 = vsel %vm488, %v587, 0
    %v605 = vsel %vm488, %v588, 0
    %v608 = vsel %vm488, %v589, 0
    %610 = vmatprep.subr.mxu0 0.0
    %611 = vmatpush1.msra.mxu0 0.0
    %612 = vmatprep.subr.mxu0 0.0
    %613 = vmatpush1.msra.mxu0 0.0
    %614 = vmatprep.subr.mxu0 0.0
    %615 = vmatpush1.msra.mxu0 0.0
    %616 = vmatprep.subr.mxu0 0.0
    %617 = vmatpush1.msra.mxu0 0.0
    %618 = vmatprep.subr.mxu0 0.0
    %619 = vmatpush1.msra.mxu0 0.0
    %620 = vmatprep.subr.mxu0 0.0
    %621 = vmatpush1.msra.mxu0 0.0
    %622 = vmatprep.subr.mxu0 0.0
    %623 = vmatpush1.msra.mxu0 0.0
    %624 = vmatprep.subr.mxu0 0.0
    %625 = vmatpush1.msra.mxu0 0.0
    %626 = vmatprep.subr.mxu0 0.0
    %627 = vmatpush1.msra.mxu0 0.0
    %628 = vmatprep.subr.mxu0 0.0
    %629 = vmatpush1.msra.mxu0 0.0
    %630 = vmatprep.subr.mxu0 0.0
    %631 = vmatpush1.msra.mxu0 0.0
    %632 = vmatprep.subr.mxu0 0.0
    %633 = vmatpush1.msra.mxu0 0.0
    %634 = vmatprep.subr.mxu0 0.0
    %635 = vmatpush1.msra.mxu0 0.0
    %636 = vmatprep.subr.mxu0 0.0
    %637 = vmatpush1.msra.mxu0 0.0
    %638 = vmatprep.subr.mxu0 0.0
    %639 = vmatpush1.msra.mxu0 0.0
    %640 = vmatprep.subr.mxu0 0.0
    %641 = vmatpush1.msra.mxu0 %v590
    %642 = vmatprep.subr.mxu0 0.0
    %643 = vmatpush2.msra.mxu0 0.0
    %644 = vmatprep.subr.mxu0 0.0
    %645 = vmatpush2.msra.mxu0 0.0
    %646 = vmatprep.subr.mxu0 0.0
    %647 = vmatpush2.msra.mxu0 0.0
    %648 = vmatprep.subr.mxu0 0.0
    %649 = vmatpush2.msra.mxu0 0.0
    %650 = vmatprep.subr.mxu0 0.0
    %651 = vmatpush2.msra.mxu0 0.0
    %652 = vmatprep.subr.mxu0 0.0
    %653 = vmatpush2.msra.mxu0 0.0
    %654 = vmatprep.subr.mxu0 0.0
    %655 = vmatpush2.msra.mxu0 0.0
    %656 = vmatprep.subr.mxu0 0.0
    %657 = vmatpush2.msra.mxu0 0.0
    %658 = vmatprep.subr.mxu0 0.0
    %659 = vmatpush2.msra.mxu0 0.0
    %660 = vmatprep.subr.mxu0 0.0
    %661 = vmatpush2.msra.mxu0 0.0
    %662 = vmatprep.subr.mxu0 0.0
    %663 = vmatpush2.msra.mxu0 0.0
    %664 = vmatprep.subr.mxu0 0.0
    %665 = vmatpush2.msra.mxu0 0.0
    %666 = vmatprep.subr.mxu0 0.0
    %667 = vmatpush2.msra.mxu0 0.0
    %668 = vmatprep.subr.mxu0 0.0
    %669 = vmatpush2.msra.mxu0 0.0
    %670 = vmatprep.subr.mxu0 0.0
    %671 = vmatpush2.msra.mxu0 0.0
    %672 = vmatprep.subr.mxu0 0.0
    %673 = vmatpush2.msra.mxu0 0.0
    %674 = vmatprep.mubr.f32.mxu0 0.0
    %675 = vmatmul.mubr.f32.gmra.mxu0 %v599
    %v676 = vpop.f32.mrf.mxu0
    %v677 = vadd.f32 %v596, %v676
    %v678 = vpop.f32.mrf.mxu0
    %679 = vmatprep.mubr.f32.mxu0 0.0
    %680 = vmatmul.mubr.f32.gmra.mxu0 %v602
    %v681 = vpop.f32.mrf.mxu0
    %v682 = vadd.f32 %v596, %v681
    %v683 = vpop.f32.mrf.mxu0
    %684 = vmatprep.mubr.f32.mxu0 0.0
    %685 = vmatmul.mubr.f32.gmra.mxu0 %v605
    %v686 = vpop.f32.mrf.mxu0
    %v687 = vadd.f32 %v596, %v686
    %v688 = vpop.f32.mrf.mxu0
    %689 = vmatprep.mubr.f32.mxu0 0.0
    %690 = vmatmul.mubr.f32.gmra.mxu0 %v608
    %v691 = vpop.f32.mrf.mxu0
    %v692 = vadd.f32 %v596, %v691
    %v693 = vpop.f32.mrf.mxu0
    %694 = vdwg.mxu0
    %695 = vxpose.xlu0.b32.start [1/16] %v677, 128
    %696 = vxpose.xlu0.b32.cont [2/16] %v682, 128
    %697 = vxpose.xlu0.b32.cont [3/16] 0.0, 128
    %698 = vxpose.xlu0.b32.cont [4/16] 0.0, 128
    %699 = vxpose.xlu0.b32.cont [5/16] 0.0, 128
    %700 = vxpose.xlu0.b32.cont [6/16] 0.0, 128
    %701 = vxpose.xlu0.b32.cont [7/16] 0.0, 128
    %702 = vxpose.xlu0.b32.cont [8/16] 0.0, 128
    %703 = vxpose.xlu0.b32.cont [9/16] 0.0, 128
    %704 = vxpose.xlu0.b32.cont [10/16] 0.0, 128
    %705 = vxpose.xlu0.b32.cont [11/16] 0.0, 128
    %706 = vxpose.xlu0.b32.cont [12/16] 0.0, 128
    %707 = vxpose.xlu0.b32.cont [13/16] 0.0, 128
    %708 = vxpose.xlu0.b32.cont [14/16] 0.0, 128
    %709 = vxpose.xlu0.b32.cont [15/16] 0.0, 128
    %710 = vxpose.xlu0.b32.end [16/16] 0.0, 128
    %v711 = vpop.trf.xlu0
    %v712 = vpop.trf.xlu0
    %v713 = vpop.trf.xlu0
    %v714 = vpop.trf.xlu0
    %v715 = vpop.trf.xlu0
    %v716 = vpop.trf.xlu0
    %v717 = vpop.trf.xlu0
    %v718 = vpop.trf.xlu0
    %v719 = vpop.trf.xlu0
    %v720 = vpop.trf.xlu0
    %v721 = vpop.trf.xlu0
    %v722 = vpop.trf.xlu0
    %v723 = vpop.trf.xlu0
    %v724 = vpop.trf.xlu0
    %v725 = vpop.trf.xlu0
    %v726 = vpop.trf.xlu0
    %727 = vxpose.xlu0.b32.start [1/16] %v687, 128
    %728 = vxpose.xlu0.b32.cont [2/16] %v692, 128
    %729 = vxpose.xlu0.b32.cont [3/16] 0.0, 128
    %730 = vxpose.xlu0.b32.cont [4/16] 0.0, 128
    %731 = vxpose.xlu0.b32.cont [5/16] 0.0, 128
    %732 = vxpose.xlu0.b32.cont [6/16] 0.0, 128
    %733 = vxpose.xlu0.b32.cont [7/16] 0.0, 128
    %734 = vxpose.xlu0.b32.cont [8/16] 0.0, 128
    %735 = vxpose.xlu0.b32.cont [9/16] 0.0, 128
    %736 = vxpose.xlu0.b32.cont [10/16] 0.0, 128
    %737 = vxpose.xlu0.b32.cont [11/16] 0.0, 128
    %738 = vxpose.xlu0.b32.cont [12/16] 0.0, 128
    %739 = vxpose.xlu0.b32.cont [13/16] 0.0, 128
    %740 = vxpose.xlu0.b32.cont [14/16] 0.0, 128
    %741 = vxpose.xlu0.b32.cont [15/16] 0.0, 128
    %742 = vxpose.xlu0.b32.end [16/16] 0.0, 128
    %v743 = vpop.trf.xlu0
    %v744 = vpop.trf.xlu0
    %v745 = vpop.trf.xlu0
    %v746 = vpop.trf.xlu0
    %v747 = vpop.trf.xlu0
    %v748 = vpop.trf.xlu0
    %v749 = vpop.trf.xlu0
    %v750 = vpop.trf.xlu0
    %v751 = vpop.trf.xlu0
    %v752 = vpop.trf.xlu0
    %v753 = vpop.trf.xlu0
    %v754 = vpop.trf.xlu0
    %v755 = vpop.trf.xlu0
    %v756 = vpop.trf.xlu0
    %v757 = vpop.trf.xlu0
    %v758 = vpop.trf.xlu0
    %v759 = vadd.f32 %v322, %v711
    %v760 = vadd.f32 %v354, %v743
    %v761 = vld [vmem:[#allocation10] sm:$0x1]
    %v762 = vld [vmem:[#allocation11] sm:$0x1]
    %v763 = vsel %vm372, %v759, 0.0
    %764 = vadd.xlane.f32.xlu0 %v763
    %v765 = vpop.xlane.xlu0 %764
    %v766 = vsel %vm372, %v760, 0.0
    %767 = vadd.xlane.f32.xlu0 %v766
    %v768 = vpop.xlane.xlu0 %767
    %v769 = vmul.f32 %v765, %v379
    %v770 = vmul.f32 %v768, %v379
    %v771 = vsub.f32 %v759, %v769
    %v772 = vsub.f32 %v760, %v770
    %v773 = vmul.f32 %v771, %v771
    %v774 = vmul.f32 %v772, %v772
    %v775 = vsel %vm372, %v773, 0.0
    %776 = vadd.xlane.f32.xlu0 %v775
    %v777 = vpop.xlane.xlu0 %776
    %v778 = vsel %vm372, %v774, 0.0
    %779 = vadd.xlane.f32.xlu0 %v778
    %v780 = vpop.xlane.xlu0 %779
    %v781 = vmul.f32 %v777, %v379
    %v782 = vmul.f32 %v780, %v379
    %v783 = vadd.f32 %v781, 1e-05
    %v784 = vadd.f32 %v782, 1e-05
    %v785 = vrsqrt.pop %v783
    %v786 = vrsqrt.pop %v784
    %v787 = vmul.f32 %v771, %v785
    %v788 = vmul.f32 %v772, %v786
    %v790 = vlaneseq
    %v791 = vshrl.u32 %v790, 7
    %v792 = vsub.s32 0, %v791
    %v793 = vrot.slane %v761, %v792
    %v795 = vmul.f32 %v787, %v793
    %v796 = vmul.f32 %v788, %v793
    %v798 = vlaneseq
    %v799 = vshrl.u32 %v798, 7
    %v800 = vsub.s32 0, %v799
    %v801 = vrot.slane %v762, %v800
    %v803 = vadd.f32 %v795, %v801
    %v804 = vadd.f32 %v796, %v801
    %v805 = vld [vmem:[%s12] sm:$0xff]
    %v806 = vld [vmem:[%s12 + $0x8] sm:$0xff]
    %v807 = vld [vmem:[#allocation13] sm:$0x1]
    %v809 = vlaneseq
    %v810 = vshrl.u32 %v809, 7
    %v811 = vsub.s32 0, %v810
    %v812 = vrot.slane %v807, %v811
    %v815 = vsel %vm372, %v803, 0
    %v818 = vsel %vm372, %v804, 0
    %820 = vmatprep.subr.mxu0 0.0
    %821 = vmatpush1.msra.mxu0 0.0
    %822 = vmatprep.subr.mxu0 0.0
    %823 = vmatpush1.msra.mxu0 0.0
    %824 = vmatprep.subr.mxu0 0.0
    %825 = vmatpush1.msra.mxu0 0.0
    %826 = vmatprep.subr.mxu0 0.0
    %827 = vmatpush1.msra.mxu0 0.0
    %828 = vmatprep.subr.mxu0 0.0
    %829 = vmatpush1.msra.mxu0 0.0
    %830 = vmatprep.subr.mxu0 0.0
    %831 = vmatpush1.msra.mxu0 0.0
    %832 = vmatprep.subr.mxu0 0.0
    %833 = vmatpush1.msra.mxu0 0.0
    %834 = vmatprep.subr.mxu0 0.0
    %835 = vmatpush1.msra.mxu0 0.0
    %836 = vmatprep.subr.mxu0 0.0
    %837 = vmatpush1.msra.mxu0 0.0
    %838 = vmatprep.subr.mxu0 0.0
    %839 = vmatpush1.msra.mxu0 0.0
    %840 = vmatprep.subr.mxu0 0.0
    %841 = vmatpush1.msra.mxu0 0.0
    %842 = vmatprep.subr.mxu0 0.0
    %843 = vmatpush1.msra.mxu0 0.0
    %844 = vmatprep.subr.mxu0 0.0
    %845 = vmatpush1.msra.mxu0 0.0
    %846 = vmatprep.subr.mxu0 0.0
    %847 = vmatpush1.msra.mxu0 0.0
    %848 = vmatprep.subr.mxu0 0.0
    %849 = vmatpush1.msra.mxu0 %v806
    %850 = vmatprep.subr.mxu0 0.0
    %851 = vmatpush1.msra.mxu0 %v805
    %852 = vmatprep.subr.mxu0 0.0
    %853 = vmatpush2.msra.mxu0 0.0
    %854 = vmatprep.subr.mxu0 0.0
    %855 = vmatpush2.msra.mxu0 0.0
    %856 = vmatprep.subr.mxu0 0.0
    %857 = vmatpush2.msra.mxu0 0.0
    %858 = vmatprep.subr.mxu0 0.0
    %859 = vmatpush2.msra.mxu0 0.0
    %860 = vmatprep.subr.mxu0 0.0
    %861 = vmatpush2.msra.mxu0 0.0
    %862 = vmatprep.subr.mxu0 0.0
    %863 = vmatpush2.msra.mxu0 0.0
    %864 = vmatprep.subr.mxu0 0.0
    %865 = vmatpush2.msra.mxu0 0.0
    %866 = vmatprep.subr.mxu0 0.0
    %867 = vmatpush2.msra.mxu0 0.0
    %868 = vmatprep.subr.mxu0 0.0
    %869 = vmatpush2.msra.mxu0 0.0
    %870 = vmatprep.subr.mxu0 0.0
    %871 = vmatpush2.msra.mxu0 0.0
    %872 = vmatprep.subr.mxu0 0.0
    %873 = vmatpush2.msra.mxu0 0.0
    %874 = vmatprep.subr.mxu0 0.0
    %875 = vmatpush2.msra.mxu0 0.0
    %876 = vmatprep.subr.mxu0 0.0
    %877 = vmatpush2.msra.mxu0 0.0
    %878 = vmatprep.subr.mxu0 0.0
    %879 = vmatpush2.msra.mxu0 0.0
    %880 = vmatprep.subr.mxu0 0.0
    %881 = vmatpush2.msra.mxu0 0.0
    %882 = vmatprep.subr.mxu0 0.0
    %883 = vmatpush2.msra.mxu0 0.0
    %884 = vmatprep.mubr.f32.mxu0 0.0
    %885 = vmatmul.mubr.f32.gmra.mxu0 %v815
    %v886 = vpop.f32.mrf.mxu0
    %v887 = vadd.f32 %v812, %v886
    %v888 = vpop.f32.mrf.mxu0
    %889 = vmatprep.mubr.f32.mxu0 0.0
    %890 = vmatmul.mubr.f32.gmra.mxu0 %v818
    %v891 = vpop.f32.mrf.mxu0
    %v892 = vadd.f32 %v812, %v891
    %v893 = vpop.f32.mrf.mxu0
    %894 = vdwg.mxu0
    %v895 = vmax.f32 %v887, 0.0
    %v896 = vmax.f32 %v892, 0.0
    %v897 = vld [vmem:[%s14] sm:$0xff]
    %v898 = vld [vmem:[%s14 + $0x8] sm:$0xff]
    %v899 = vld [vmem:[%s14 + $0x10] sm:$0xff]
    %v900 = vld [vmem:[%s14 + $0x18] sm:$0xff]
    %v901 = vld [vmem:[#allocation14] sm:$0x1]
    %v903 = vlaneseq
    %v904 = vshrl.u32 %v903, 7
    %v905 = vsub.s32 0, %v904
    %v906 = vrot.slane %v901, %v905
    %v909 = vsel %vm208, %v895, 0
    %v912 = vsel %vm208, %v896, 0
    %914 = vmatprep.subr.mxu0 0.0
    %915 = vmatpush1.msra.mxu0 0.0
    %916 = vmatprep.subr.mxu0 0.0
    %917 = vmatpush1.msra.mxu0 0.0
    %918 = vmatprep.subr.mxu0 0.0
    %919 = vmatpush1.msra.mxu0 0.0
    %920 = vmatprep.subr.mxu0 0.0
    %921 = vmatpush1.msra.mxu0 0.0
    %922 = vmatprep.subr.mxu0 0.0
    %923 = vmatpush1.msra.mxu0 0.0
    %924 = vmatprep.subr.mxu0 0.0
    %925 = vmatpush1.msra.mxu0 0.0
    %926 = vmatprep.subr.mxu0 0.0
    %927 = vmatpush1.msra.mxu0 0.0
    %928 = vmatprep.subr.mxu0 0.0
    %929 = vmatpush1.msra.mxu0 0.0
    %930 = vmatprep.subr.mxu0 0.0
    %931 = vmatpush1.msra.mxu0 0.0
    %932 = vmatprep.subr.mxu0 0.0
    %933 = vmatpush1.msra.mxu0 0.0
    %934 = vmatprep.subr.mxu0 0.0
    %935 = vmatpush1.msra.mxu0 0.0
    %936 = vmatprep.subr.mxu0 0.0
    %937 = vmatpush1.msra.mxu0 0.0
    %938 = vmatprep.subr.mxu0 0.0
    %939 = vmatpush1.msra.mxu0 %v900
    %940 = vmatprep.subr.mxu0 0.0
    %941 = vmatpush1.msra.mxu0 %v899
    %942 = vmatprep.subr.mxu0 0.0
    %943 = vmatpush1.msra.mxu0 %v898
    %944 = vmatprep.subr.mxu0 0.0
    %945 = vmatpush1.msra.mxu0 %v897
    %946 = vmatprep.subr.mxu0 0.0
    %947 = vmatpush2.msra.mxu0 0.0
    %948 = vmatprep.subr.mxu0 0.0
    %949 = vmatpush2.msra.mxu0 0.0
    %950 = vmatprep.subr.mxu0 0.0
    %951 = vmatpush2.msra.mxu0 0.0
    %952 = vmatprep.subr.mxu0 0.0
    %953 = vmatpush2.msra.mxu0 0.0
    %954 = vmatprep.subr.mxu0 0.0
    %955 = vmatpush2.msra.mxu0 0.0
    %956 = vmatprep.subr.mxu0 0.0
    %957 = vmatpush2.msra.mxu0 0.0
    %958 = vmatprep.subr.mxu0 0.0
    %959 = vmatpush2.msra.mxu0 0.0
    %960 = vmatprep.subr.mxu0 0.0
    %961 = vmatpush2.msra.mxu0 0.0
    %962 = vmatprep.subr.mxu0 0.0
    %963 = vmatpush2.msra.mxu0 0.0
    %964 = vmatprep.subr.mxu0 0.0
    %965 = vmatpush2.msra.mxu0 0.0
    %966 = vmatprep.subr.mxu0 0.0
    %967 = vmatpush2.msra.mxu0 0.0
    %968 = vmatprep.subr.mxu0 0.0
    %969 = vmatpush2.msra.mxu0 0.0
    %970 = vmatprep.subr.mxu0 0.0
    %971 = vmatpush2.msra.mxu0 0.0
    %972 = vmatprep.subr.mxu0 0.0
    %973 = vmatpush2.msra.mxu0 0.0
    %974 = vmatprep.subr.mxu0 0.0
    %975 = vmatpush2.msra.mxu0 0.0
    %976 = vmatprep.subr.mxu0 0.0
    %977 = vmatpush2.msra.mxu0 0.0
    %978 = vmatprep.mubr.f32.mxu0 0.0
    %979 = vmatmul.mubr.f32.gmra.mxu0 %v909
    %v980 = vpop.f32.mrf.mxu0
    %v981 = vadd.f32 %v906, %v980
    %v982 = vpop.f32.mrf.mxu0
    %983 = vmatprep.mubr.f32.mxu0 0.0
    %984 = vmatmul.mubr.f32.gmra.mxu0 %v912
    %v985 = vpop.f32.mrf.mxu0
    %v986 = vadd.f32 %v906, %v985
    %v987 = vpop.f32.mrf.mxu0
    %988 = vdwg.mxu0
    %v989 = vadd.f32 %v759, %v981
    %v990 = vadd.f32 %v760, %v986
    %s991 = scalar_lea.vmem [#allocation2], 1
    %v992 = vld [vmem:[%s991] sm:$0x1]
    %s993 = scalar_lea.vmem [#allocation5], 1
    %v994 = vld [vmem:[%s993] sm:$0x1]
    %v995 = vsel %vm372, %v989, 0.0
    %996 = vadd.xlane.f32.xlu0 %v995
    %v997 = vpop.xlane.xlu0 %996
    %v998 = vsel %vm372, %v990, 0.0
    %999 = vadd.xlane.f32.xlu0 %v998
    %v1000 = vpop.xlane.xlu0 %999
    %v1001 = vmul.f32 %v997, %v379
    %v1002 = vmul.f32 %v1000, %v379
    %v1003 = vsub.f32 %v989, %v1001
    %v1004 = vsub.f32 %v990, %v1002
    %v1005 = vmul.f32 %v1003, %v1003
    %v1006 = vmul.f32 %v1004, %v1004
    %v1007 = vsel %vm372, %v1005, 0.0
    %1008 = vadd.xlane.f32.xlu0 %v1007
    %v1009 = vpop.xlane.xlu0 %1008
    %v1010 = vsel %vm372, %v1006, 0.0
    %1011 = vadd.xlane.f32.xlu0 %v1010
    %v1012 = vpop.xlane.xlu0 %1011
    %v1013 = vmul.f32 %v1009, %v379
    %v1014 = vmul.f32 %v1012, %v379
    %v1015 = vadd.f32 %v1013, 1e-05
    %v1016 = vadd.f32 %v1014, 1e-05
    %v1017 = vrsqrt.pop %v1015
    %v1018 = vrsqrt.pop %v1016
    %v1019 = vmul.f32 %v1003, %v1017
    %v1020 = vmul.f32 %v1004, %v1018
    %v1022 = vlaneseq
    %v1023 = vshrl.u32 %v1022, 7
    %v1024 = vsub.s32 0, %v1023
    %v1025 = vrot.slane %v992, %v1024
    %v1027 = vmul.f32 %v1019, %v1025
    %v1028 = vmul.f32 %v1020, %v1025
    %v1030 = vlaneseq
    %v1031 = vshrl.u32 %v1030, 7
    %v1032 = vsub.s32 0, %v1031
    %v1033 = vrot.slane %v994, %v1032
    %v1035 = vadd.f32 %v1027, %v1033
    %v1036 = vadd.f32 %v1028, %v1033
    %1037 = vxpose.xlu0.b32.start [1/16] %v1035, 128
    %1038 = vxpose.xlu0.b32.cont [2/16] 0.0, 128
    %1039 = vxpose.xlu0.b32.cont [3/16] 0.0, 128
    %1040 = vxpose.xlu0.b32.cont [4/16] 0.0, 128
    %1041 = vxpose.xlu0.b32.cont [5/16] 0.0, 128
    %1042 = vxpose.xlu0.b32.cont [6/16] 0.0, 128
    %1043 = vxpose.xlu0.b32.cont [7/16] 0.0, 128
    %1044 = vxpose.xlu0.b32.cont [8/16] 0.0, 128
    %1045 = vxpose.xlu0.b32.cont [9/16] 0.0, 128
    %1046 = vxpose.xlu0.b32.cont [10/16] 0.0, 128
    %1047 = vxpose.xlu0.b32.cont [11/16] 0.0, 128
    %1048 = vxpose.xlu0.b32.cont [12/16] 0.0, 128
    %1049 = vxpose.xlu0.b32.cont [13/16] 0.0, 128
    %1050 = vxpose.xlu0.b32.cont [14/16] 0.0, 128
    %1051 = vxpose.xlu0.b32.cont [15/16] 0.0, 128
    %1052 = vxpose.xlu0.b32.end [16/16] 0.0, 128
    %v1053 = vpop.trf.xlu0
    %v1054 = vpop.trf.xlu0
    %v1055 = vpop.trf.xlu0
    %v1056 = vpop.trf.xlu0
    %v1057 = vpop.trf.xlu0
    %v1058 = vpop.trf.xlu0
    %v1059 = vpop.trf.xlu0
    %v1060 = vpop.trf.xlu0
    %v1061 = vpop.trf.xlu0
    %v1062 = vpop.trf.xlu0
    %v1063 = vpop.trf.xlu0
    %v1064 = vpop.trf.xlu0
    %v1065 = vpop.trf.xlu0
    %v1066 = vpop.trf.xlu0
    %v1067 = vpop.trf.xlu0
    %v1068 = vpop.trf.xlu0
    %1069 = vxpose.xlu0.b32.start [1/16] %v1036, 128
    %1070 = vxpose.xlu0.b32.cont [2/16] 0.0, 128
    %1071 = vxpose.xlu0.b32.cont [3/16] 0.0, 128
    %1072 = vxpose.xlu0.b32.cont [4/16] 0.0, 128
    %1073 = vxpose.xlu0.b32.cont [5/16] 0.0, 128
    %1074 = vxpose.xlu0.b32.cont [6/16] 0.0, 128
    %1075 = vxpose.xlu0.b32.cont [7/16] 0.0, 128
    %1076 = vxpose.xlu0.b32.cont [8/16] 0.0, 128
    %1077 = vxpose.xlu0.b32.cont [9/16] 0.0, 128
    %1078 = vxpose.xlu0.b32.cont [10/16] 0.0, 128
    %1079 = vxpose.xlu0.b32.cont [11/16] 0.0, 128
    %1080 = vxpose.xlu0.b32.cont [12/16] 0.0, 128
    %1081 = vxpose.xlu0.b32.cont [13/16] 0.0, 128
    %1082 = vxpose.xlu0.b32.cont [14/16] 0.0, 128
    %1083 = vxpose.xlu0.b32.cont [15/16] 0.0, 128
    %1084 = vxpose.xlu0.b32.end [16/16] 0.0, 128
    %v1085 = vpop.trf.xlu0
    %v1086 = vpop.trf.xlu0
    %v1087 = vpop.trf.xlu0
    %v1088 = vpop.trf.xlu0
    %v1089 = vpop.trf.xlu0
    %v1090 = vpop.trf.xlu0
    %v1091 = vpop.trf.xlu0
    %v1092 = vpop.trf.xlu0
    %v1093 = vpop.trf.xlu0
    %v1094 = vpop.trf.xlu0
    %v1095 = vpop.trf.xlu0
    %v1096 = vpop.trf.xlu0
    %v1097 = vpop.trf.xlu0
    %v1098 = vpop.trf.xlu0
    %v1099 = vpop.trf.xlu0
    %v1100 = vpop.trf.xlu0
    %s1101 = scalar_lea.vmem %s6, 8
    %v1102 = vld [vmem:[%s1101] sm:$0xff]
    %s1103 = scalar_lea.vmem [#allocation7], 1
    %v1104 = vld [vmem:[%s1103] sm:$0x1]
    %v1106 = vlaneseq
    %v1107 = vshrl.u32 %v1106, 7
    %v1108 = vsub.s32 0, %v1107
    %v1109 = vrot.slane %v1104, %v1108
    %v1112 = vsel %vm488, %v1053, 0
    %v1115 = vsel %vm488, %v1054, 0
    %v1118 = vsel %vm488, %v1085, 0
    %v1121 = vsel %vm488, %v1086, 0
    %1123 = vmatprep.subr.mxu0 0.0
    %1124 = vmatpush1.msra.mxu0 0.0
    %1125 = vmatprep.subr.mxu0 0.0
    %1126 = vmatpush1.msra.mxu0 0.0
    %1127 = vmatprep.subr.mxu0 0.0
    %1128 = vmatpush1.msra.mxu0 0.0
    %1129 = vmatprep.subr.mxu0 0.0
    %1130 = vmatpush1.msra.mxu0 0.0
    %1131 = vmatprep.subr.mxu0 0.0
    %1132 = vmatpush1.msra.mxu0 0.0
    %1133 = vmatprep.subr.mxu0 0.0
    %1134 = vmatpush1.msra.mxu0 0.0
    %1135 = vmatprep.subr.mxu0 0.0
    %1136 = vmatpush1.msra.mxu0 0.0
    %1137 = vmatprep.subr.mxu0 0.0
    %1138 = vmatpush1.msra.mxu0 0.0
    %1139 = vmatprep.subr.mxu0 0.0
    %1140 = vmatpush1.msra.mxu0 0.0
    %1141 = vmatprep.subr.mxu0 0.0
    %1142 = vmatpush1.msra.mxu0 0.0
    %1143 = vmatprep.subr.mxu0 0.0
    %1144 = vmatpush1.msra.mxu0 0.0
    %1145 = vmatprep.subr.mxu0 0.0
    %1146 = vmatpush1.msra.mxu0 0.0
    %1147 = vmatprep.subr.mxu0 0.0
    %1148 = vmatpush1.msra.mxu0 0.0
    %1149 = vmatprep.subr.mxu0 0.0
    %1150 = vmatpush1.msra.mxu0 0.0
    %1151 = vmatprep.subr.mxu0 0.0
    %1152 = vmatpush1.msra.mxu0 0.0
    %1153 = vmatprep.subr.mxu0 0.0
    %1154 = vmatpush1.msra.mxu0 %v1102
    %1155 = vmatprep.subr.mxu0 0.0
    %1156 = vmatpush2.msra.mxu0 0.0
    %1157 = vmatprep.subr.mxu0 0.0
    %1158 = vmatpush2.msra.mxu0 0.0
    %1159 = vmatprep.subr.mxu0 0.0
    %1160 = vmatpush2.msra.mxu0 0.0
    %1161 = vmatprep.subr.mxu0 0.0
    %1162 = vmatpush2.msra.mxu0 0.0
    %1163 = vmatprep.subr.mxu0 0.0
    %1164 = vmatpush2.msra.mxu0 0.0
    %1165 = vmatprep.subr.mxu0 0.0
    %1166 = vmatpush2.msra.mxu0 0.0
    %1167 = vmatprep.subr.mxu0 0.0
    %1168 = vmatpush2.msra.mxu0 0.0
    %1169 = vmatprep.subr.mxu0 0.0
    %1170 = vmatpush2.msra.mxu0 0.0
    %1171 = vmatprep.subr.mxu0 0.0
    %1172 = vmatpush2.msra.mxu0 0.0
    %1173 = vmatprep.subr.mxu0 0.0
    %1174 = vmatpush2.msra.mxu0 0.0
    %1175 = vmatprep.subr.mxu0 0.0
    %1176 = vmatpush2.msra.mxu0 0.0
    %1177 = vmatprep.subr.mxu0 0.0
    %1178 = vmatpush2.msra.mxu0 0.0
    %1179 = vmatprep.subr.mxu0 0.0
    %1180 = vmatpush2.msra.mxu0 0.0
    %1181 = vmatprep.subr.mxu0 0.0
    %1182 = vmatpush2.msra.mxu0 0.0
    %1183 = vmatprep.subr.mxu0 0.0
    %1184 = vmatpush2.msra.mxu0 0.0
    %1185 = vmatprep.subr.mxu0 0.0
    %1186 = vmatpush2.msra.mxu0 0.0
    %1187 = vmatprep.mubr.f32.mxu0 0.0
    %1188 = vmatmul.mubr.f32.gmra.mxu0 %v1112
    %v1189 = vpop.f32.mrf.mxu0
    %v1190 = vadd.f32 %v1109, %v1189
    %v1191 = vpop.f32.mrf.mxu0
    %1192 = vmatprep.mubr.f32.mxu0 0.0
    %1193 = vmatmul.mubr.f32.gmra.mxu0 %v1115
    %v1194 = vpop.f32.mrf.mxu0
    %v1195 = vadd.f32 %v1109, %v1194
    %v1196 = vpop.f32.mrf.mxu0
    %1197 = vmatprep.mubr.f32.mxu0 0.0
    %1198 = vmatmul.mubr.f32.gmra.mxu0 %v1118
    %v1199 = vpop.f32.mrf.mxu0
    %v1200 = vadd.f32 %v1109, %v1199
    %v1201 = vpop.f32.mrf.mxu0
    %1202 = vmatprep.mubr.f32.mxu0 0.0
    %1203 = vmatmul.mubr.f32.gmra.mxu0 %v1121
    %v1204 = vpop.f32.mrf.mxu0
    %v1205 = vadd.f32 %v1109, %v1204
    %v1206 = vpop.f32.mrf.mxu0
    %1207 = vdwg.mxu0
    %v1208 = vmax.f32 %v1190, 0.0
    %v1209 = vmax.f32 %v1195, 0.0
    %v1210 = vmax.f32 %v1200, 0.0
    %v1211 = vmax.f32 %v1205, 0.0
    %s1212 = scalar_lea.vmem %s8, 8
    %v1213 = vld [vmem:[%s1212] sm:$0xff]
    %s1214 = scalar_lea.vmem [#allocation8], 1
    %v1215 = vld [vmem:[%s1214] sm:$0x1]
    %v1217 = vlaneseq
    %v1218 = vshrl.u32 %v1217, 7
    %v1219 = vsub.s32 0, %v1218
    %v1220 = vrot.slane %v1215, %v1219
    %v1223 = vsel %vm488, %v1208, 0
    %v1226 = vsel %vm488, %v1209, 0
    %v1229 = vsel %vm488, %v1210, 0
    %v1232 = vsel %vm488, %v1211, 0
    %1234 = vmatprep.subr.mxu0 0.0
    %1235 = vmatpush1.msra.mxu0 0.0
    %1236 = vmatprep.subr.mxu0 0.0
    %1237 = vmatpush1.msra.mxu0 0.0
    %1238 = vmatprep.subr.mxu0 0.0
    %1239 = vmatpush1.msra.mxu0 0.0
    %1240 = vmatprep.subr.mxu0 0.0
    %1241 = vmatpush1.msra.mxu0 0.0
    %1242 = vmatprep.subr.mxu0 0.0
    %1243 = vmatpush1.msra.mxu0 0.0
    %1244 = vmatprep.subr.mxu0 0.0
    %1245 = vmatpush1.msra.mxu0 0.0
    %1246 = vmatprep.subr.mxu0 0.0
    %1247 = vmatpush1.msra.mxu0 0.0
    %1248 = vmatprep.subr.mxu0 0.0
    %1249 = vmatpush1.msra.mxu0 0.0
    %1250 = vmatprep.subr.mxu0 0.0
    %1251 = vmatpush1.msra.mxu0 0.0
    %1252 = vmatprep.subr.mxu0 0.0
    %1253 = vmatpush1.msra.mxu0 0.0
    %1254 = vmatprep.subr.mxu0 0.0
    %1255 = vmatpush1.msra.mxu0 0.0
    %1256 = vmatprep.subr.mxu0 0.0
    %1257 = vmatpush1.msra.mxu0 0.0
    %1258 = vmatprep.subr.mxu0 0.0
    %1259 = vmatpush1.msra.mxu0 0.0
    %1260 = vmatprep.subr.mxu0 0.0
    %1261 = vmatpush1.msra.mxu0 0.0
    %1262 = vmatprep.subr.mxu0 0.0
    %1263 = vmatpush1.msra.mxu0 0.0
    %1264 = vmatprep.subr.mxu0 0.0
    %1265 = vmatpush1.msra.mxu0 %v1213
    %1266 = vmatprep.subr.mxu0 0.0
    %1267 = vmatpush2.msra.mxu0 0.0
    %1268 = vmatprep.subr.mxu0 0.0
    %1269 = vmatpush2.msra.mxu0 0.0
    %1270 = vmatprep.subr.mxu0 0.0
    %1271 = vmatpush2.msra.mxu0 0.0
    %1272 = vmatprep.subr.mxu0 0.0
    %1273 = vmatpush2.msra.mxu0 0.0
    %1274 = vmatprep.subr.mxu0 0.0
    %1275 = vmatpush2.msra.mxu0 0.0
    %1276 = vmatprep.subr.mxu0 0.0
    %1277 = vmatpush2.msra.mxu0 0.0
    %1278 = vmatprep.subr.mxu0 0.0
    %1279 = vmatpush2.msra.mxu0 0.0
    %1280 = vmatprep.subr.mxu0 0.0
    %1281 = vmatpush2.msra.mxu0 0.0
    %1282 = vmatprep.subr.mxu0 0.0
    %1283 = vmatpush2.msra.mxu0 0.0
    %1284 = vmatprep.subr.mxu0 0.0
    %1285 = vmatpush2.msra.mxu0 0.0
    %1286 = vmatprep.subr.mxu0 0.0
    %1287 = vmatpush2.msra.mxu0 0.0
    %1288 = vmatprep.subr.mxu0 0.0
    %1289 = vmatpush2.msra.mxu0 0.0
    %1290 = vmatprep.subr.mxu0 0.0
    %1291 = vmatpush2.msra.mxu0 0.0
    %1292 = vmatprep.subr.mxu0 0.0
    %1293 = vmatpush2.msra.mxu0 0.0
    %1294 = vmatprep.subr.mxu0 0.0
    %1295 = vmatpush2.msra.mxu0 0.0
    %1296 = vmatprep.subr.mxu0 0.0
    %1297 = vmatpush2.msra.mxu0 0.0
    %1298 = vmatprep.mubr.f32.mxu0 0.0
    %1299 = vmatmul.mubr.f32.gmra.mxu0 %v1223
    %v1300 = vpop.f32.mrf.mxu0
    %v1301 = vadd.f32 %v1220, %v1300
    %v1302 = vpop.f32.mrf.mxu0
    %1303 = vmatprep.mubr.f32.mxu0 0.0
    %1304 = vmatmul.mubr.f32.gmra.mxu0 %v1226
    %v1305 = vpop.f32.mrf.mxu0
    %v1306 = vadd.f32 %v1220, %v1305
    %v1307 = vpop.f32.mrf.mxu0
    %1308 = vmatprep.mubr.f32.mxu0 0.0
    %1309 = vmatmul.mubr.f32.gmra.mxu0 %v1229
    %v1310 = vpop.f32.mrf.mxu0
    %v1311 = vadd.f32 %v1220, %v1310
    %v1312 = vpop.f32.mrf.mxu0
    %1313 = vmatprep.mubr.f32.mxu0 0.0
    %1314 = vmatmul.mubr.f32.gmra.mxu0 %v1232
    %v1315 = vpop.f32.mrf.mxu0
    %v1316 = vadd.f32 %v1220, %v1315
    %v1317 = vpop.f32.mrf.mxu0
    %1318 = vdwg.mxu0
    %1319 = vxpose.xlu0.b32.start [1/16] %v1301, 128
    %1320 = vxpose.xlu0.b32.cont [2/16] %v1306, 128
    %1321 = vxpose.xlu0.b32.cont [3/16] 0.0, 128
    %1322 = vxpose.xlu0.b32.cont [4/16] 0.0, 128
    %1323 = vxpose.xlu0.b32.cont [5/16] 0.0, 128
    %1324 = vxpose.xlu0.b32.cont [6/16] 0.0, 128
    %1325 = vxpose.xlu0.b32.cont [7/16] 0.0, 128
    %1326 = vxpose.xlu0.b32.cont [8/16] 0.0, 128
    %1327 = vxpose.xlu0.b32.cont [9/16] 0.0, 128
    %1328 = vxpose.xlu0.b32.cont [10/16] 0.0, 128
    %1329 = vxpose.xlu0.b32.cont [11/16] 0.0, 128
    %1330 = vxpose.xlu0.b32.cont [12/16] 0.0, 128
    %1331 = vxpose.xlu0.b32.cont [13/16] 0.0, 128
    %1332 = vxpose.xlu0.b32.cont [14/16] 0.0, 128
    %1333 = vxpose.xlu0.b32.cont [15/16] 0.0, 128
    %1334 = vxpose.xlu0.b32.end [16/16] 0.0, 128
    %v1335 = vpop.trf.xlu0
    %v1336 = vpop.trf.xlu0
    %v1337 = vpop.trf.xlu0
    %v1338 = vpop.trf.xlu0
    %v1339 = vpop.trf.xlu0
    %v1340 = vpop.trf.xlu0
    %v1341 = vpop.trf.xlu0
    %v1342 = vpop.trf.xlu0
    %v1343 = vpop.trf.xlu0
    %v1344 = vpop.trf.xlu0
    %v1345 = vpop.trf.xlu0
    %v1346 = vpop.trf.xlu0
    %v1347 = vpop.trf.xlu0
    %v1348 = vpop.trf.xlu0
    %v1349 = vpop.trf.xlu0
    %v1350 = vpop.trf.xlu0
    %1351 = vxpose.xlu0.b32.start [1/16] %v1311, 128
    %1352 = vxpose.xlu0.b32.cont [2/16] %v1316, 128
    %1353 = vxpose.xlu0.b32.cont [3/16] 0.0, 128
    %1354 = vxpose.xlu0.b32.cont [4/16] 0.0, 128
    %1355 = vxpose.xlu0.b32.cont [5/16] 0.0, 128
    %1356 = vxpose.xlu0.b32.cont [6/16] 0.0, 128
    %1357 = vxpose.xlu0.b32.cont [7/16] 0.0, 128
    %1358 = vxpose.xlu0.b32.cont [8/16] 0.0, 128
    %1359 = vxpose.xlu0.b32.cont [9/16] 0.0, 128
    %1360 = vxpose.xlu0.b32.cont [10/16] 0.0, 128
    %1361 = vxpose.xlu0.b32.cont [11/16] 0.0, 128
    %1362 = vxpose.xlu0.b32.cont [12/16] 0.0, 128
    %1363 = vxpose.xlu0.b32.cont [13/16] 0.0, 128
    %1364 = vxpose.xlu0.b32.cont [14/16] 0.0, 128
    %1365 = vxpose.xlu0.b32.cont [15/16] 0.0, 128
    %1366 = vxpose.xlu0.b32.end [16/16] 0.0, 128
    %v1367 = vpop.trf.xlu0
    %v1368 = vpop.trf.xlu0
    %v1369 = vpop.trf.xlu0
    %v1370 = vpop.trf.xlu0
    %v1371 = vpop.trf.xlu0
    %v1372 = vpop.trf.xlu0
    %v1373 = vpop.trf.xlu0
    %v1374 = vpop.trf.xlu0
    %v1375 = vpop.trf.xlu0
    %v1376 = vpop.trf.xlu0
    %v1377 = vpop.trf.xlu0
    %v1378 = vpop.trf.xlu0
    %v1379 = vpop.trf.xlu0
    %v1380 = vpop.trf.xlu0
    %v1381 = vpop.trf.xlu0
    %v1382 = vpop.trf.xlu0
    %v1383 = vadd.f32 %v989, %v1335
    %v1384 = vadd.f32 %v990, %v1367
    %s1385 = scalar_lea.vmem [#allocation10], 1
    %v1386 = vld [vmem:[%s1385] sm:$0x1]
    %s1387 = scalar_lea.vmem [#allocation11], 1
    %v1388 = vld [vmem:[%s1387] sm:$0x1]
    %v1389 = vsel %vm372, %v1383, 0.0
    %1390 = vadd.xlane.f32.xlu0 %v1389
    %v1391 = vpop.xlane.xlu0 %1390
    %v1392 = vsel %vm372, %v1384, 0.0
    %1393 = vadd.xlane.f32.xlu0 %v1392
    %v1394 = vpop.xlane.xlu0 %1393
    %v1395 = vmul.f32 %v1391, %v379
    %v1396 = vmul.f32 %v1394, %v379
    %v1397 = vsub.f32 %v1383, %v1395
    %v1398 = vsub.f32 %v1384, %v1396
    %v1399 = vmul.f32 %v1397, %v1397
    %v1400 = vmul.f32 %v1398, %v1398
    %v1401 = vsel %vm372, %v1399, 0.0
    %1402 = vadd.xlane.f32.xlu0 %v1401
    %v1403 = vpop.xlane.xlu0 %1402
    %v1404 = vsel %vm372, %v1400, 0.0
    %1405 = vadd.xlane.f32.xlu0 %v1404
    %v1406 = vpop.xlane.xlu0 %1405
    %v1407 = vmul.f32 %v1403, %v379
    %v1408 = vmul.f32 %v1406, %v379
    %v1409 = vadd.f32 %v1407, 1e-05
    %v1410 = vadd.f32 %v1408, 1e-05
    %v1411 = vrsqrt.pop %v1409
    %v1412 = vrsqrt.pop %v1410
    %v1413 = vmul.f32 %v1397, %v1411
    %v1414 = vmul.f32 %v1398, %v1412
    %v1416 = vlaneseq
    %v1417 = vshrl.u32 %v1416, 7
    %v1418 = vsub.s32 0, %v1417
    %v1419 = vrot.slane %v1386, %v1418
    %v1421 = vmul.f32 %v1413, %v1419
    %v1422 = vmul.f32 %v1414, %v1419
    %v1424 = vlaneseq
    %v1425 = vshrl.u32 %v1424, 7
    %v1426 = vsub.s32 0, %v1425
    %v1427 = vrot.slane %v1388, %v1426
    %v1429 = vadd.f32 %v1421, %v1427
    %v1430 = vadd.f32 %v1422, %v1427
    %s1431 = scalar_lea.vmem %s12, 16
    %v1432 = vld [vmem:[%s1431] sm:$0xff]
    %v1433 = vld [vmem:[%s1431 + $0x8] sm:$0xff]
    %s1434 = scalar_lea.vmem [#allocation13], 1
    %v1435 = vld [vmem:[%s1434] sm:$0x1]
    %v1437 = vlaneseq
    %v1438 = vshrl.u32 %v1437, 7
    %v1439 = vsub.s32 0, %v1438
    %v1440 = vrot.slane %v1435, %v1439
    %v1443 = vsel %vm372, %v1429, 0
    %v1446 = vsel %vm372, %v1430, 0
    %1448 = vmatprep.subr.mxu0 0.0
    %1449 = vmatpush1.msra.mxu0 0.0
    %1450 = vmatprep.subr.mxu0 0.0
    %1451 = vmatpush1.msra.mxu0 0.0
    %1452 = vmatprep.subr.mxu0 0.0
    %1453 = vmatpush1.msra.mxu0 0.0
    %1454 = vmatprep.subr.mxu0 0.0
    %1455 = vmatpush1.msra.mxu0 0.0
    %1456 = vmatprep.subr.mxu0 0.0
    %1457 = vmatpush1.msra.mxu0 0.0
    %1458 = vmatprep.subr.mxu0 0.0
    %1459 = vmatpush1.msra.mxu0 0.0
    %1460 = vmatprep.subr.mxu0 0.0
    %1461 = vmatpush1.msra.mxu0 0.0
    %1462 = vmatprep.subr.mxu0 0.0
    %1463 = vmatpush1.msra.mxu0 0.0
    %1464 = vmatprep.subr.mxu0 0.0
    %1465 = vmatpush1.msra.mxu0 0.0
    %1466 = vmatprep.subr.mxu0 0.0
    %1467 = vmatpush1.msra.mxu0 0.0
    %1468 = vmatprep.subr.mxu0 0.0
    %1469 = vmatpush1.msra.mxu0 0.0
    %1470 = vmatprep.subr.mxu0 0.0
    %1471 = vmatpush1.msra.mxu0 0.0
    %1472 = vmatprep.subr.mxu0 0.0
    %1473 = vmatpush1.msra.mxu0 0.0
    %1474 = vmatprep.subr.mxu0 0.0
    %1475 = vmatpush1.msra.mxu0 0.0
    %1476 = vmatprep.subr.mxu0 0.0
    %1477 = vmatpush1.msra.mxu0 %v1433
    %1478 = vmatprep.subr.mxu0 0.0
    %1479 = vmatpush1.msra.mxu0 %v1432
    %1480 = vmatprep.subr.mxu0 0.0
    %1481 = vmatpush2.msra.mxu0 0.0
    %1482 = vmatprep.subr.mxu0 0.0
    %1483 = vmatpush2.msra.mxu0 0.0
    %1484 = vmatprep.subr.mxu0 0.0
    %1485 = vmatpush2.msra.mxu0 0.0
    %1486 = vmatprep.subr.mxu0 0.0
    %1487 = vmatpush2.msra.mxu0 0.0
    %1488 = vmatprep.subr.mxu0 0.0
    %1489 = vmatpush2.msra.mxu0 0.0
    %1490 = vmatprep.subr.mxu0 0.0
    %1491 = vmatpush2.msra.mxu0 0.0
    %1492 = vmatprep.subr.mxu0 0.0
    %1493 = vmatpush2.msra.mxu0 0.0
    %1494 = vmatprep.subr.mxu0 0.0
    %1495 = vmatpush2.msra.mxu0 0.0
    %1496 = vmatprep.subr.mxu0 0.0
    %1497 = vmatpush2.msra.mxu0 0.0
    %1498 = vmatprep.subr.mxu0 0.0
    %1499 = vmatpush2.msra.mxu0 0.0
    %1500 = vmatprep.subr.mxu0 0.0
    %1501 = vmatpush2.msra.mxu0 0.0
    %1502 = vmatprep.subr.mxu0 0.0
    %1503 = vmatpush2.msra.mxu0 0.0
    %1504 = vmatprep.subr.mxu0 0.0
    %1505 = vmatpush2.msra.mxu0 0.0
    %1506 = vmatprep.subr.mxu0 0.0
    %1507 = vmatpush2.msra.mxu0 0.0
    %1508 = vmatprep.subr.mxu0 0.0
    %1509 = vmatpush2.msra.mxu0 0.0
    %1510 = vmatprep.subr.mxu0 0.0
    %1511 = vmatpush2.msra.mxu0 0.0
    %1512 = vmatprep.mubr.f32.mxu0 0.0
    %1513 = vmatmul.mubr.f32.gmra.mxu0 %v1443
    %v1514 = vpop.f32.mrf.mxu0
    %v1515 = vadd.f32 %v1440, %v1514
    %v1516 = vpop.f32.mrf.mxu0
    %1517 = vmatprep.mubr.f32.mxu0 0.0
    %1518 = vmatmul.mubr.f32.gmra.mxu0 %v1446
    %v1519 = vpop.f32.mrf.mxu0
    %v1520 = vadd.f32 %v1440, %v1519
    %v1521 = vpop.f32.mrf.mxu0
    %1522 = vdwg.mxu0
    %v1523 = vmax.f32 %v1515, 0.0
    %v1524 = vmax.f32 %v1520, 0.0
    %s1525 = scalar_lea.vmem %s14, 32
    %v1526 = vld [vmem:[%s1525] sm:$0xff]
    %v1527 = vld [vmem:[%s1525 + $0x8] sm:$0xff]
    %v1528 = vld [vmem:[%s1525 + $0x10] sm:$0xff]
    %v1529 = vld [vmem:[%s1525 + $0x18] sm:$0xff]
    %s1530 = scalar_lea.vmem [#allocation14], 1
    %v1531 = vld [vmem:[%s1530] sm:$0x1]
    %v1533 = vlaneseq
    %v1534 = vshrl.u32 %v1533, 7
    %v1535 = vsub.s32 0, %v1534
    %v1536 = vrot.slane %v1531, %v1535
    %v1539 = vsel %vm208, %v1523, 0
    %v1542 = vsel %vm208, %v1524, 0
    %1544 = vmatprep.subr.mxu0 0.0
    %1545 = vmatpush1.msra.mxu0 0.0
    %1546 = vmatprep.subr.mxu0 0.0
    %1547 = vmatpush1.msra.mxu0 0.0
    %1548 = vmatprep.subr.mxu0 0.0
    %1549 = vmatpush1.msra.mxu0 0.0
    %1550 = vmatprep.subr.mxu0 0.0
    %1551 = vmatpush1.msra.mxu0 0.0
    %1552 = vmatprep.subr.mxu0 0.0
    %1553 = vmatpush1.msra.mxu0 0.0
    %1554 = vmatprep.subr.mxu0 0.0
    %1555 = vmatpush1.msra.mxu0 0.0
    %1556 = vmatprep.subr.mxu0 0.0
    %1557 = vmatpush1.msra.mxu0 0.0
    %1558 = vmatprep.subr.mxu0 0.0
    %1559 = vmatpush1.msra.mxu0 0.0
    %1560 = vmatprep.subr.mxu0 0.0
    %1561 = vmatpush1.msra.mxu0 0.0
    %1562 = vmatprep.subr.mxu0 0.0
    %1563 = vmatpush1.msra.mxu0 0.0
    %1564 = vmatprep.subr.mxu0 0.0
    %1565 = vmatpush1.msra.mxu0 0.0
    %1566 = vmatprep.subr.mxu0 0.0
    %1567 = vmatpush1.msra.mxu0 0.0
    %1568 = vmatprep.subr.mxu0 0.0
    %1569 = vmatpush1.msra.mxu0 %v1529
    %1570 = vmatprep.subr.mxu0 0.0
    %1571 = vmatpush1.msra.mxu0 %v1528
    %1572 = vmatprep.subr.mxu0 0.0
    %1573 = vmatpush1.msra.mxu0 %v1527
    %1574 = vmatprep.subr.mxu0 0.0
    %1575 = vmatpush1.msra.mxu0 %v1526
    %1576 = vmatprep.subr.mxu0 0.0
    %1577 = vmatpush2.msra.mxu0 0.0
    %1578 = vmatprep.subr.mxu0 0.0
    %1579 = vmatpush2.msra.mxu0 0.0
    %1580 = vmatprep.subr.mxu0 0.0
    %1581 = vmatpush2.msra.mxu0 0.0
    %1582 = vmatprep.subr.mxu0 0.0
    %1583 = vmatpush2.msra.mxu0 0.0
    %1584 = vmatprep.subr.mxu0 0.0
    %1585 = vmatpush2.msra.mxu0 0.0
    %1586 = vmatprep.subr.mxu0 0.0
    %1587 = vmatpush2.msra.mxu0 0.0
    %1588 = vmatprep.subr.mxu0 0.0
    %1589 = vmatpush2.msra.mxu0 0.0
    %1590 = vmatprep.subr.mxu0 0.0
    %1591 = vmatpush2.msra.mxu0 0.0
    %1592 = vmatprep.subr.mxu0 0.0
    %1593 = vmatpush2.msra.mxu0 0.0
    %1594 = vmatprep.subr.mxu0 0.0
    %1595 = vmatpush2.msra.mxu0 0.0
    %1596 = vmatprep.subr.mxu0 0.0
    %1597 = vmatpush2.msra.mxu0 0.0
    %1598 = vmatprep.subr.mxu0 0.0
    %1599 = vmatpush2.msra.mxu0 0.0
    %1600 = vmatprep.subr.mxu0 0.0
    %1601 = vmatpush2.msra.mxu0 0.0
    %1602 = vmatprep.subr.mxu0 0.0
    %1603 = vmatpush2.msra.mxu0 0.0
    %1604 = vmatprep.subr.mxu0 0.0
    %1605 = vmatpush2.msra.mxu0 0.0
    %1606 = vmatprep.subr.mxu0 0.0
    %1607 = vmatpush2.msra.mxu0 0.0
    %1608 = vmatprep.mubr.f32.mxu0 0.0
    %1609 = vmatmul.mubr.f32.gmra.mxu0 %v1539
    %v1610 = vpop.f32.mrf.mxu0
    %v1611 = vadd.f32 %v1536, %v1610
    %v1612 = vpop.f32.mrf.mxu0
    %1613 = vmatprep.mubr.f32.mxu0 0.0
    %1614 = vmatmul.mubr.f32.gmra.mxu0 %v1542
    %v1615 = vpop.f32.mrf.mxu0
    %v1616 = vadd.f32 %v1536, %v1615
    %v1617 = vpop.f32.mrf.mxu0
    %1618 = vdwg.mxu0
    %v1619 = vadd.f32 %v1383, %v1611
    %v1620 = vadd.f32 %v1384, %v1616
    %v1621 = vld [vmem:[%s16] sm:$0x1]
    %v1622 = vld [vmem:[%s17] sm:$0x1]
    %v1623 = vsel %vm372, %v1619, 0.0
    %1624 = vadd.xlane.f32.xlu0 %v1623
    %v1625 = vpop.xlane.xlu0 %1624
    %v1626 = vsel %vm372, %v1620, 0.0
    %1627 = vadd.xlane.f32.xlu0 %v1626
    %v1628 = vpop.xlane.xlu0 %1627
    %v1629 = vmul.f32 %v1625, %v379
    %v1630 = vmul.f32 %v1628, %v379
    %v1631 = vsub.f32 %v1619, %v1629
    %v1632 = vsub.f32 %v1620, %v1630
    %v1633 = vmul.f32 %v1631, %v1631
    %v1634 = vmul.f32 %v1632, %v1632
    %v1635 = vsel %vm372, %v1633, 0.0
    %1636 = vadd.xlane.f32.xlu0 %v1635
    %v1637 = vpop.xlane.xlu0 %1636
    %v1638 = vsel %vm372, %v1634, 0.0
    %1639 = vadd.xlane.f32.xlu0 %v1638
    %v1640 = vpop.xlane.xlu0 %1639
    %v1641 = vmul.f32 %v1637, %v379
    %v1642 = vmul.f32 %v1640, %v379
    %v1643 = vadd.f32 %v1641, 1e-05
    %v1644 = vadd.f32 %v1642, 1e-05
    %v1645 = vrsqrt.pop %v1643
    %v1646 = vrsqrt.pop %v1644
    %v1647 = vmul.f32 %v1631, %v1645
    %v1648 = vmul.f32 %v1632, %v1646
    %v1650 = vlaneseq
    %v1651 = vshrl.u32 %v1650, 7
    %v1652 = vsub.s32 0, %v1651
    %v1653 = vrot.slane %v1621, %v1652
    %v1655 = vmul.f32 %v1647, %v1653
    %v1656 = vmul.f32 %v1648, %v1653
    %v1658 = vlaneseq
    %v1659 = vshrl.u32 %v1658, 7
    %v1660 = vsub.s32 0, %v1659
    %v1661 = vrot.slane %v1622, %v1660
    %v1663 = vadd.f32 %v1655, %v1661
    %v1664 = vadd.f32 %v1656, %v1661
    %1665 = vxpose.xlu0.b32.start [1/16] %v1663, 128
    %1666 = vxpose.xlu0.b32.cont [2/16] 0.0, 128
    %1667 = vxpose.xlu0.b32.cont [3/16] 0.0, 128
    %1668 = vxpose.xlu0.b32.cont [4/16] 0.0, 128
    %1669 = vxpose.xlu0.b32.cont [5/16] 0.0, 128
    %1670 = vxpose.xlu0.b32.cont [6/16] 0.0, 128
    %1671 = vxpose.xlu0.b32.cont [7/16] 0.0, 128
    %1672 = vxpose.xlu0.b32.cont [8/16] 0.0, 128
    %1673 = vxpose.xlu0.b32.cont [9/16] 0.0, 128
    %1674 = vxpose.xlu0.b32.cont [10/16] 0.0, 128
    %1675 = vxpose.xlu0.b32.cont [11/16] 0.0, 128
    %1676 = vxpose.xlu0.b32.cont [12/16] 0.0, 128
    %1677 = vxpose.xlu0.b32.cont [13/16] 0.0, 128
    %1678 = vxpose.xlu0.b32.cont [14/16] 0.0, 128
    %1679 = vxpose.xlu0.b32.cont [15/16] 0.0, 128
    %1680 = vxpose.xlu0.b32.end [16/16] 0.0, 128
    %v1681 = vpop.trf.xlu0
    %v1682 = vpop.trf.xlu0
    %v1683 = vpop.trf.xlu0
    %v1684 = vpop.trf.xlu0
    %v1685 = vpop.trf.xlu0
    %v1686 = vpop.trf.xlu0
    %v1687 = vpop.trf.xlu0
    %v1688 = vpop.trf.xlu0
    %v1689 = vpop.trf.xlu0
    %v1690 = vpop.trf.xlu0
    %v1691 = vpop.trf.xlu0
    %v1692 = vpop.trf.xlu0
    %v1693 = vpop.trf.xlu0
    %v1694 = vpop.trf.xlu0
    %v1695 = vpop.trf.xlu0
    %v1696 = vpop.trf.xlu0
    %1697 = vxpose.xlu0.b32.start [1/16] %v1664, 128
    %1698 = vxpose.xlu0.b32.cont [2/16] 0.0, 128
    %1699 = vxpose.xlu0.b32.cont [3/16] 0.0, 128
    %1700 = vxpose.xlu0.b32.cont [4/16] 0.0, 128
    %1701 = vxpose.xlu0.b32.cont [5/16] 0.0, 128
    %1702 = vxpose.xlu0.b32.cont [6/16] 0.0, 128
    %1703 = vxpose.xlu0.b32.cont [7/16] 0.0, 128
    %1704 = vxpose.xlu0.b32.cont [8/16] 0.0, 128
    %1705 = vxpose.xlu0.b32.cont [9/16] 0.0, 128
    %1706 = vxpose.xlu0.b32.cont [10/16] 0.0, 128
    %1707 = vxpose.xlu0.b32.cont [11/16] 0.0, 128
    %1708 = vxpose.xlu0.b32.cont [12/16] 0.0, 128
    %1709 = vxpose.xlu0.b32.cont [13/16] 0.0, 128
    %1710 = vxpose.xlu0.b32.cont [14/16] 0.0, 128
    %1711 = vxpose.xlu0.b32.cont [15/16] 0.0, 128
    %1712 = vxpose.xlu0.b32.end [16/16] 0.0, 128
    %v1713 = vpop.trf.xlu0
    %v1714 = vpop.trf.xlu0
    %v1715 = vpop.trf.xlu0
    %v1716 = vpop.trf.xlu0
    %v1717 = vpop.trf.xlu0
    %v1718 = vpop.trf.xlu0
    %v1719 = vpop.trf.xlu0
    %v1720 = vpop.trf.xlu0
    %v1721 = vpop.trf.xlu0
    %v1722 = vpop.trf.xlu0
    %v1723 = vpop.trf.xlu0
    %v1724 = vpop.trf.xlu0
    %v1725 = vpop.trf.xlu0
    %v1726 = vpop.trf.xlu0
    %v1727 = vpop.trf.xlu0
    %v1728 = vpop.trf.xlu0
    %v1729 = vsel %vm488, %v1681, 0.0
    %1730 = vadd.xlane.f32.xlu0 %v1729
    %v1731 = vpop.xlane.xlu0 %1730
    %v1732 = vsel %vm488, %v1682, 0.0
    %1733 = vadd.xlane.f32.xlu0 %v1732
    %v1734 = vpop.xlane.xlu0 %1733
    %v1735 = vsel %vm488, %v1713, 0.0
    %1736 = vadd.xlane.f32.xlu0 %v1735
    %v1737 = vpop.xlane.xlu0 %1736
    %v1738 = vsel %vm488, %v1714, 0.0
    %1739 = vadd.xlane.f32.xlu0 %v1738
    %v1740 = vpop.xlane.xlu0 %1739
    %v1741 = vrcp.pop 8.0
    %v1742 = vmul.f32 %v1731, %v1741
    %v1743 = vmul.f32 %v1734, %v1741
    %v1744 = vmul.f32 %v1737, %v1741
    %v1745 = vmul.f32 %v1740, %v1741
    %v1746 = vld [vmem:[%s18] sm:$0xff]
    %v1747 = vld [vmem:[%s18 + $0x8] sm:$0xff]
    %v1748 = vld [vmem:[%s19] sm:$0x1]
    %v1750 = vlaneseq
    %v1751 = vshrl.u32 %v1750, 7
    %v1752 = vsub.s32 0, %v1751
    %v1753 = vrot.slane %v1748, %v1752
    %v1759 = vlaneseq
    %v1760 = vand.u32 %v1759, 127
    %v1761 = vlaneseq
    %v1762 = vshrl.u32 %v1761, 7
    %v1763 = vsub.s32 %v1760, %v1762
    %v1764 = vrot.slane %v1742, %v1763
    %v1765 = vadd.s32 %v1760, 4294967288
    %v1766 = vlaneseq
    %v1767 = vshrl.u32 %v1766, 7
    %v1768 = vsub.s32 %v1765, %v1767
    %v1769 = vrot.slane %v1743, %v1768
    %vm1770 = vcmask 130112
    %v1771 = vsel %vm1770, %v1769, %v1764
    %v1772 = vlaneseq
    %v1773 = vshrl.u32 %v1772, 7
    %v1774 = vsub.s32 %v1760, %v1773
    %v1775 = vrot.slane %v1744, %v1774
    %v1776 = vlaneseq
    %v1777 = vshrl.u32 %v1776, 7
    %v1778 = vsub.s32 %v1765, %v1777
    %v1779 = vrot.slane %v1745, %v1778
    %v1780 = vsel %vm1770, %v1779, %v1775
    %vm1781 = vcmask 1041409
    %v1782 = vsel %vm1781, %v1780, %v1771
    %v1783 = vsel %vm372, %v1782, 0
    %1785 = vmatprep.subr.mxu0 0.0
    %1786 = vmatpush1.msra.mxu0 0.0
    %1787 = vmatprep.subr.mxu0 0.0
    %1788 = vmatpush1.msra.mxu0 0.0
    %1789 = vmatprep.subr.mxu0 0.0
    %1790 = vmatpush1.msra.mxu0 0.0
    %1791 = vmatprep.subr.mxu0 0.0
    %1792 = vmatpush1.msra.mxu0 0.0
    %1793 = vmatprep.subr.mxu0 0.0
    %1794 = vmatpush1.msra.mxu0 0.0
    %1795 = vmatprep.subr.mxu0 0.0
    %1796 = vmatpush1.msra.mxu0 0.0
    %1797 = vmatprep.subr.mxu0 0.0
    %1798 = vmatpush1.msra.mxu0 0.0
    %1799 = vmatprep.subr.mxu0 0.0
    %1800 = vmatpush1.msra.mxu0 0.0
    %1801 = vmatprep.subr.mxu0 0.0
    %1802 = vmatpush1.msra.mxu0 0.0
    %1803 = vmatprep.subr.mxu0 0.0
    %1804 = vmatpush1.msra.mxu0 0.0
    %1805 = vmatprep.subr.mxu0 0.0
    %1806 = vmatpush1.msra.mxu0 0.0
    %1807 = vmatprep.subr.mxu0 0.0
    %1808 = vmatpush1.msra.mxu0 0.0
    %1809 = vmatprep.subr.mxu0 0.0
    %1810 = vmatpush1.msra.mxu0 0.0
    %1811 = vmatprep.subr.mxu0 0.0
    %1812 = vmatpush1.msra.mxu0 0.0
    %1813 = vmatprep.subr.mxu0 0.0
    %1814 = vmatpush1.msra.mxu0 %v1747
    %1815 = vmatprep.subr.mxu0 0.0
    %1816 = vmatpush1.msra.mxu0 %v1746
    %1817 = vmatprep.subr.mxu0 0.0
    %1818 = vmatpush2.msra.mxu0 0.0
    %1819 = vmatprep.subr.mxu0 0.0
    %1820 = vmatpush2.msra.mxu0 0.0
    %1821 = vmatprep.subr.mxu0 0.0
    %1822 = vmatpush2.msra.mxu0 0.0
    %1823 = vmatprep.subr.mxu0 0.0
    %1824 = vmatpush2.msra.mxu0 0.0
    %1825 = vmatprep.subr.mxu0 0.0
    %1826 = vmatpush2.msra.mxu0 0.0
    %1827 = vmatprep.subr.mxu0 0.0
    %1828 = vmatpush2.msra.mxu0 0.0
    %1829 = vmatprep.subr.mxu0 0.0
    %1830 = vmatpush2.msra.mxu0 0.0
    %1831 = vmatprep.subr.mxu0 0.0
    %1832 = vmatpush2.msra.mxu0 0.0
    %1833 = vmatprep.subr.mxu0 0.0
    %1834 = vmatpush2.msra.mxu0 0.0
    %1835 = vmatprep.subr.mxu0 0.0
    %1836 = vmatpush2.msra.mxu0 0.0
    %1837 = vmatprep.subr.mxu0 0.0
    %1838 = vmatpush2.msra.mxu0 0.0
    %1839 = vmatprep.subr.mxu0 0.0
    %1840 = vmatpush2.msra.mxu0 0.0
    %1841 = vmatprep.subr.mxu0 0.0
    %1842 = vmatpush2.msra.mxu0 0.0
    %1843 = vmatprep.subr.mxu0 0.0
    %1844 = vmatpush2.msra.mxu0 0.0
    %1845 = vmatprep.subr.mxu0 0.0
    %1846 = vmatpush2.msra.mxu0 0.0
    %1847 = vmatprep.subr.mxu0 0.0
    %1848 = vmatpush2.msra.mxu0 0.0
    %1849 = vmatprep.mubr.f32.mxu0 0.0
    %1850 = vmatmul.mubr.f32.gmra.mxu0 %v1783
    %v1851 = vpop.f32.mrf.mxu0
    %v1852 = vadd.f32 %v1753, %v1851
    %v1853 = vpop.f32.mrf.mxu0
    %1854 = vdwg.mxu0
    %v1855 = vmax.f32 %v1852, 0.0
    %v1856 = vld [vmem:[%s20] sm:$0xff]
    %v1857 = vld [vmem:[%s20 + $0x8] sm:$0xff]
    %v1858 = vld [vmem:[%s20 + $0x10] sm:$0xff]
    %v1859 = vld [vmem:[%s20 + $0x18] sm:$0xff]
    %v1860 = vld [vmem:[%s21] sm:$0x1]
    %v1862 = vlaneseq
    %v1863 = vshrl.u32 %v1862, 7
    %v1864 = vsub.s32 0, %v1863
    %v1865 = vrot.slane %v1860, %v1864
    %v1868 = vsel %vm208, %v1855, 0
    %1870 = vmatprep.subr.mxu0 0.0
    %1871 = vmatpush1.msra.mxu0 0.0
    %1872 = vmatprep.subr.mxu0 0.0
    %1873 = vmatpush1.msra.mxu0 0.0
    %1874 = vmatprep.subr.mxu0 0.0
    %1875 = vmatpush1.msra.mxu0 0.0
    %1876 = vmatprep.subr.mxu0 0.0
    %1877 = vmatpush1.msra.mxu0 0.0
    %1878 = vmatprep.subr.mxu0 0.0
    %1879 = vmatpush1.msra.mxu0 0.0
    %1880 = vmatprep.subr.mxu0 0.0
    %1881 = vmatpush1.msra.mxu0 0.0
    %1882 = vmatprep.subr.mxu0 0.0
    %1883 = vmatpush1.msra.mxu0 0.0
    %1884 = vmatprep.subr.mxu0 0.0
    %1885 = vmatpush1.msra.mxu0 0.0
    %1886 = vmatprep.subr.mxu0 0.0
    %1887 = vmatpush1.msra.mxu0 0.0
    %1888 = vmatprep.subr.mxu0 0.0
    %1889 = vmatpush1.msra.mxu0 0.0
    %1890 = vmatprep.subr.mxu0 0.0
    %1891 = vmatpush1.msra.mxu0 0.0
    %1892 = vmatprep.subr.mxu0 0.0
    %1893 = vmatpush1.msra.mxu0 0.0
    %1894 = vmatprep.subr.mxu0 0.0
    %1895 = vmatpush1.msra.mxu0 %v1859
    %1896 = vmatprep.subr.mxu0 0.0
    %1897 = vmatpush1.msra.mxu0 %v1858
    %1898 = vmatprep.subr.mxu0 0.0
    %1899 = vmatpush1.msra.mxu0 %v1857
    %1900 = vmatprep.subr.mxu0 0.0
    %1901 = vmatpush1.msra.mxu0 %v1856
    %1902 = vmatprep.subr.mxu0 0.0
    %1903 = vmatpush2.msra.mxu0 0.0
    %1904 = vmatprep.subr.mxu0 0.0
    %1905 = vmatpush2.msra.mxu0 0.0
    %1906 = vmatprep.subr.mxu0 0.0
    %1907 = vmatpush2.msra.mxu0 0.0
    %1908 = vmatprep.subr.mxu0 0.0
    %1909 = vmatpush2.msra.mxu0 0.0
    %1910 = vmatprep.subr.mxu0 0.0
    %1911 = vmatpush2.msra.mxu0 0.0
    %1912 = vmatprep.subr.mxu0 0.0
    %1913 = vmatpush2.msra.mxu0 0.0
    %1914 = vmatprep.subr.mxu0 0.0
    %1915 = vmatpush2.msra.mxu0 0.0
    %1916 = vmatprep.subr.mxu0 0.0
    %1917 = vmatpush2.msra.mxu0 0.0
    %1918 = vmatprep.subr.mxu0 0.0
    %1919 = vmatpush2.msra.mxu0 0.0
    %1920 = vmatprep.subr.mxu0 0.0
    %1921 = vmatpush2.msra.mxu0 0.0
    %1922 = vmatprep.subr.mxu0 0.0
    %1923 = vmatpush2.msra.mxu0 0.0
    %1924 = vmatprep.subr.mxu0 0.0
    %1925 = vmatpush2.msra.mxu0 0.0
    %1926 = vmatprep.subr.mxu0 0.0
    %1927 = vmatpush2.msra.mxu0 0.0
    %1928 = vmatprep.subr.mxu0 0.0
    %1929 = vmatpush2.msra.mxu0 0.0
    %1930 = vmatprep.subr.mxu0 0.0
    %1931 = vmatpush2.msra.mxu0 0.0
    %1932 = vmatprep.subr.mxu0 0.0
    %1933 = vmatpush2.msra.mxu0 0.0
    %1934 = vmatprep.mubr.f32.mxu0 0.0
    %1935 = vmatmul.mubr.f32.gmra.mxu0 %v1868
    %v1936 = vpop.f32.mrf.mxu0
    %v1937 = vadd.f32 %v1865, %v1936
    %v1938 = vpop.f32.mrf.mxu0
    %1939 = vdwg.mxu0
    %v1940 = vmax.f32 %v1937, 0.0
    %v1941 = vld [vmem:[%s22] sm:$0xff]
    %v1942 = vld [vmem:[%s22 + $0x8] sm:$0xff]
    %v1943 = vld [vmem:[%s22 + $0x10] sm:$0xff]
    %v1944 = vld [vmem:[%s22 + $0x18] sm:$0xff]
    %v1945 = vld [vmem:[%s23] sm:$0x1]
    %v1947 = vlaneseq
    %v1948 = vshrl.u32 %v1947, 7
    %v1949 = vsub.s32 0, %v1948
    %v1950 = vrot.slane %v1945, %v1949
    %v1953 = vsel %vm208, %v1940, 0
    %1955 = vmatprep.subr.mxu0 0.0
    %1956 = vmatpush1.msra.mxu0 0.0
    %1957 = vmatprep.subr.mxu0 0.0
    %1958 = vmatpush1.msra.mxu0 0.0
    %1959 = vmatprep.subr.mxu0 0.0
    %1960 = vmatpush1.msra.mxu0 0.0
    %1961 = vmatprep.subr.mxu0 0.0
    %1962 = vmatpush1.msra.mxu0 0.0
    %1963 = vmatprep.subr.mxu0 0.0
    %1964 = vmatpush1.msra.mxu0 0.0
    %1965 = vmatprep.subr.mxu0 0.0
    %1966 = vmatpush1.msra.mxu0 0.0
    %1967 = vmatprep.subr.mxu0 0.0
    %1968 = vmatpush1.msra.mxu0 0.0
    %1969 = vmatprep.subr.mxu0 0.0
    %1970 = vmatpush1.msra.mxu0 0.0
    %1971 = vmatprep.subr.mxu0 0.0
    %1972 = vmatpush1.msra.mxu0 0.0
    %1973 = vmatprep.subr.mxu0 0.0
    %1974 = vmatpush1.msra.mxu0 0.0
    %1975 = vmatprep.subr.mxu0 0.0
    %1976 = vmatpush1.msra.mxu0 0.0
    %1977 = vmatprep.subr.mxu0 0.0
    %1978 = vmatpush1.msra.mxu0 0.0
    %1979 = vmatprep.subr.mxu0 0.0
    %1980 = vmatpush1.msra.mxu0 %v1944
    %1981 = vmatprep.subr.mxu0 0.0
    %1982 = vmatpush1.msra.mxu0 %v1943
    %1983 = vmatprep.subr.mxu0 0.0
    %1984 = vmatpush1.msra.mxu0 %v1942
    %1985 = vmatprep.subr.mxu0 0.0
    %1986 = vmatpush1.msra.mxu0 %v1941
    %1987 = vmatprep.subr.mxu0 0.0
    %1988 = vmatpush2.msra.mxu0 0.0
    %1989 = vmatprep.subr.mxu0 0.0
    %1990 = vmatpush2.msra.mxu0 0.0
    %1991 = vmatprep.subr.mxu0 0.0
    %1992 = vmatpush2.msra.mxu0 0.0
    %1993 = vmatprep.subr.mxu0 0.0
    %1994 = vmatpush2.msra.mxu0 0.0
    %1995 = vmatprep.subr.mxu0 0.0
    %1996 = vmatpush2.msra.mxu0 0.0
    %1997 = vmatprep.subr.mxu0 0.0
    %1998 = vmatpush2.msra.mxu0 0.0
    %1999 = vmatprep.subr.mxu0 0.0
    %2000 = vmatpush2.msra.mxu0 0.0
    %2001 = vmatprep.subr.mxu0 0.0
    %2002 = vmatpush2.msra.mxu0 0.0
    %2003 = vmatprep.subr.mxu0 0.0
    %2004 = vmatpush2.msra.mxu0 0.0
    %2005 = vmatprep.subr.mxu0 0.0
    %2006 = vmatpush2.msra.mxu0 0.0
    %2007 = vmatprep.subr.mxu0 0.0
    %2008 = vmatpush2.msra.mxu0 0.0
    %2009 = vmatprep.subr.mxu0 0.0
    %2010 = vmatpush2.msra.mxu0 0.0
    %2011 = vmatprep.subr.mxu0 0.0
    %2012 = vmatpush2.msra.mxu0 0.0
    %2013 = vmatprep.subr.mxu0 0.0
    %2014 = vmatpush2.msra.mxu0 0.0
    %2015 = vmatprep.subr.mxu0 0.0
    %2016 = vmatpush2.msra.mxu0 0.0
    %2017 = vmatprep.subr.mxu0 0.0
    %2018 = vmatpush2.msra.mxu0 0.0
    %2019 = vmatprep.mubr.f32.mxu0 0.0
    %2020 = vmatmul.mubr.f32.gmra.mxu0 %v1953
    %v2021 = vpop.f32.mrf.mxu0
    %v2022 = vadd.f32 %v1950, %v2021
    %v2023 = vpop.f32.mrf.mxu0
    %2024 = vdwg.mxu0
    %vm2025 = vcmask 91136
    %2026 = vst.msk [vmem:[#allocation16] sm:$0x3] %vm2025, %v2022
    // Predicated region
    $region130: #{tpu_custom_call.1} parent=1 // pred_check
      _
    $region131: #{tpu_custom_call.1} parent=1 // pred_check_branch
      %2028 = sbr.rel (0) target = $region133
    $region132: #{tpu_custom_call.1} parent=1 // pred_region
      %s2030 = ssub.s32 32, 32
      %2031 = vsyncadd [#allocation4], %s2030
      %s2033 = sshll.u32 [#allocation16], 4
      %s2034 = int_to_ptr.vmem [resolvable:$true] %s2033
      %2036 = dma.vmem_to_hbm [thread:$0]  %s2034, 32, %s24, [#allocation4]
    $region133: #{tpu_custom_call.1} parent=1 // pred_fallthru
      _
    // Predicated region
    $region134: #{tpu_custom_call.1} parent=1 // pred_check
      _
    $region135: #{tpu_custom_call.1} parent=1 // pred_check_branch
      %2038 = sbr.rel (0) target = $region137
    $region136: #{tpu_custom_call.1} parent=1 // pred_region
      %2039 = dma.done [#allocation4], 32
    $region137: #{tpu_custom_call.1} parent=1 // pred_fallthru
      _
    %2040 = vsyncpa [#allocation3], 1
    %2041 = vsyncpa [#allocation6], 1
    %2042 = vsyncpa [#allocation9], 1
    %2043 = vsyncpa [#allocation12], 1
    %2044 = vsyncpa [#allocation15], 1
    %2045 = vsyncpa [#allocation4], 1

</llo_original>
